<compile_context>
chip_gen: v7x
topology: tpu7x:2x2x1
jax: 0.10.0
libtpu: 0.0.40
codegen_flags: <defaults>
</compile_context>

<pallas_src>
import functools

import jax
import jax.numpy as jnp
from jax.experimental import pallas as pl
from jax.experimental.pallas import tpu as pltpu

_VMEM_LIMIT = 32 * 1024 * 1024  # above v5e's 16 MiB scoped default, safe on v6e/v7x


# ----------------------------------------------------------------------------
# Kernel A: fused 4-layer DGCNN graph convolution (one graph per grid step)
# ----------------------------------------------------------------------------
def _gconv_fused_kernel(a_ref, x_ref, *rest):
    o_ref = rest[-1]
    wb_refs = rest[:-1]                               # (w0, b0, w1, b1, ...)
    a16 = a_ref[...]                                  # (N, N) bf16 (0/1 -> exact)
    h = x_ref[...]                                    # (N, F) f32
    n = a16.shape[0]

    # node_degs = row-degree + 1 (self loop); exact divide (fidelity vs reference)
    deg = jnp.sum(a16.astype(jnp.float32), axis=-1, keepdims=True) + 1.0
    inv_deg = 1.0 / deg

    outs = []
    for i in range(0, len(wb_refs), 2):
        w_ref, b_ref = wb_refs[i], wb_refs[i + 1]
        # (A+I) h : bf16 MXU inputs, f32 accumulation
        pooled = jnp.dot(a16, h.astype(jnp.bfloat16),
                         preferred_element_type=jnp.float32) + h
        y = jnp.dot(pooled.astype(jnp.bfloat16), w_ref[...].astype(jnp.bfloat16),
                    preferred_element_type=jnp.float32) + b_ref[...]
        h = jnp.tanh(y * inv_deg)
        outs.append(h)

    d_total = sum(o.shape[-1] for o in outs)
    pad = o_ref.shape[-1] - d_total
    if pad > 0:                                       # lane-dense padded slab
        outs.append(jnp.zeros((n, pad), jnp.float32))
    o_ref[...] = jnp.concatenate(outs, axis=-1)       # single unmasked (N, 128) store


def gconv_stack(adj_bf16, node_feat, gconv_params):
    B, N, _ = adj_bf16.shape
    F = node_feat.shape[-1]
    d_total = sum(w.shape[-1] for (w, _) in gconv_params)
    d_pad = ((d_total + 127) // 128) * 128            # lane-dense output width
    flat = [t for wb in gconv_params for t in wb]

    in_specs = [
        pl.BlockSpec((None, N, N), lambda b: (b, 0, 0)),   # per-graph adjacency (bf16)
        pl.BlockSpec((None, N, F), lambda b: (b, 0, 0)),   # per-graph node features
    ]
    for t in flat:                                         # small weights, full-resident
        in_specs.append(pl.BlockSpec(t.shape, lambda b, nd=t.ndim: (0,) * nd))

    out = pl.pallas_call(
        _gconv_fused_kernel,
        out_shape=jax.ShapeDtypeStruct((B, N, d_pad), jnp.float32),
        grid=(B,),
        in_specs=in_specs,
        out_specs=pl.BlockSpec((None, N, d_pad), lambda b: (b, 0, 0)),
        compiler_params=pltpu.CompilerParams(
            dimension_semantics=("parallel",),             # megacore / 2-TC sharding
            vmem_limit_bytes=_VMEM_LIMIT),
    )(adj_bf16, node_feat, *flat)
    return out, d_total


# ----------------------------------------------------------------------------
# Kernel B: fused readout (conv1d/maxpool/conv1d/dense) + MLPClassifier head
# (one graph per grid step; all weights 2-D, no batch broadcast)
# ----------------------------------------------------------------------------
def _readout_mlp_kernel(spp_ref, w1p_ref, b1p_ref, w2_ref, b2_ref,
                        wo_ref, bo_ref, wm1_ref, bm1_ref, wm2_ref, bm2_ref,
                        o_ref, *, c1, kw2, l2):
    spp = spp_ref[...]                                # (L1, 2*D): paired time steps

    # Conv1d(1, C1, kernel=D, stride=D) + ReLU on the (even, odd) pair per row.
    z1 = jnp.dot(spp.astype(jnp.bfloat16), w1p_ref[...].astype(jnp.bfloat16),
                 preferred_element_type=jnp.float32) + b1p_ref[...]
    z1 = jnp.maximum(z1, 0.0)                         # (L1, 2*C1)

    # MaxPool1d(2, 2): elementwise max of the two lane halves.
    pooled = jnp.maximum(z1[:, :c1], z1[:, c1:])      # (L1, C1)

    # Conv1d(C1, C2, kernel=kw2) + ReLU: dense im2col, time stays on sublanes.
    taps = jnp.concatenate([pooled[j:j + l2, :] for j in range(kw2)],
                           axis=-1)                   # (L2, kw2*C1)
    z2 = jnp.dot(taps.astype(jnp.bfloat16), w2_ref[...].astype(jnp.bfloat16),
                 preferred_element_type=jnp.float32) + b2_ref[...]
    z2 = jnp.maximum(z2, 0.0)                         # (L2, C2)

    # Flatten (time-major) + out_params Linear; double ReLU of reference -> one ReLU.
    z2f = jnp.concatenate([z2[p:p + 1, :] for p in range(l2)], axis=-1)  # (1, L2*C2)
    emb = jnp.dot(z2f.astype(jnp.bfloat16), wo_ref[...].astype(jnp.bfloat16),
                  preferred_element_type=jnp.float32) + bo_ref[...]
    emb = jnp.maximum(emb, 0.0)                       # (1, out_dim)

    # MLPClassifier: Linear + ReLU + Linear + log_softmax
    h = jnp.dot(emb.astype(jnp.bfloat16), wm1_ref[...].astype(jnp.bfloat16),
                preferred_element_type=jnp.float32) + bm1_ref[...]
    h = jnp.maximum(h, 0.0)
    logits = jnp.dot(h.astype(jnp.bfloat16), wm2_ref[...].astype(jnp.bfloat16),
                     preferred_element_type=jnp.float32) + bm2_ref[...]
    m = jnp.max(logits, axis=-1, keepdims=True)
    z = logits - m
    lse = jnp.log(jnp.sum(jnp.exp(z), axis=-1, keepdims=True))
    o_ref[...] = z - lse                              # (1, num_class) log-probs


def prepare_readout_params(readout_params):
    """Layout plumbing done ONCE per parameter set (not per forward step)."""
    w1, b1, w2f, b2, wo, bo = readout_params
    D, c1 = w1.shape
    # conv1 weight duplicated block-diagonally for the (even, odd) paired-lane layout
    w1p = jnp.zeros((2 * D, 2 * c1), jnp.float32)
    w1p = w1p.at[:D, :c1].set(w1).at[D:, c1:].set(w1)
    b1p = jnp.concatenate([b1, b1], axis=-1)
    return (w1p, b1p, w2f, b2, wo, bo)


def readout_mlp(sp, prepared_readout, mlp_params):
    w1p, b1p, w2f, b2, wo, bo = prepared_readout
    wm1, bm1, wm2, bm2 = mlp_params
    B, k, D = sp.shape
    c1 = w1p.shape[-1] // 2
    kw2 = w2f.shape[0] // c1
    l1 = k // 2                                       # MaxPool1d(2, 2) output length
    l2 = l1 - kw2 + 1                                 # Conv1d(C1, C2, kw2) output length
    num_class = wm2.shape[-1]
    assert k % 2 == 0 and l2 >= 1

    # pair adjacent time steps on the lane axis (free reshape, fuses into the gather)
    spp = sp.reshape(B, l1, 2 * D)

    weights = (w1p, b1p, w2f, b2, wo, bo, wm1, bm1, wm2, bm2)
    in_specs = [pl.BlockSpec((None, l1, 2 * D), lambda b: (b, 0, 0))]
    for t in weights:
        in_specs.append(pl.BlockSpec(t.shape, lambda b, nd=t.ndim: (0,) * nd))

    kernel = functools.partial(_readout_mlp_kernel, c1=c1, kw2=kw2, l2=l2)
    out = pl.pallas_call(
        kernel,
        out_shape=jax.ShapeDtypeStruct((B, 1, num_class), jnp.float32),
        grid=(B,),
        in_specs=in_specs,
        out_specs=pl.BlockSpec((None, 1, num_class), lambda b: (b, 0, 0)),
        compiler_params=pltpu.CompilerParams(
            dimension_semantics=("parallel",),
            vmem_limit_bytes=_VMEM_LIMIT),
    )(spp, *weights)
    return out[:, 0, :]


# ----------------------------------------------------------------------------
# Full Classifier.forward
# ----------------------------------------------------------------------------
def classifier_forward(params, adj_bf16, node_feat, labels, sort_k):
    # fused 4-layer graph convolution -> (B, N, d_pad) lane-dense slab
    concat, d_total = gconv_stack(adj_bf16, node_feat, params["gconv"])

    # SortPooling (JAX glue: data-dependent top-k row gather on the last real channel)
    # TODO(synk): variable graph sizes / zero padding when sort_k > num_nodes not
    #             handled (fixed N >= sort_k per graph in this synthetic batch).
    # TODO(synk): at scale, fuse this gather into Kernel B via
    #             PrefetchScalarGridSpec(num_scalar_prefetch=1) + pl.Element row maps.
    sort_channel = concat[:, :, d_total - 1]
    idx = jnp.argsort(-sort_channel, axis=1)[:, :sort_k]
    sp = jnp.take_along_axis(concat[:, :, :d_total], idx[:, :, None], axis=1)  # (B,k,D)

    # fused conv1d / maxpool / conv1d / dense / MLP head -> log-probs
    logits = readout_mlp(sp, params["readout_prepared"], params["mlp"])  # (B, num_class)

    # NLL loss / accuracy (tiny reductions, plain JAX glue)
    B = logits.shape[0]
    loss = -jnp.mean(logits[jnp.arange(B), labels])
    pred = jnp.argmax(logits, axis=1)
    acc = jnp.mean((pred == labels).astype(jnp.float32))
    return logits, loss, acc


# ----------------------------------------------------------------------------
# Deterministic synthetic parameter init (shapes mirror DGCNN/MLPClassifier __init__,
# stored pre-transposed / regrouped into matmul-friendly layouts)
# ----------------------------------------------------------------------------
def init_params(key, feat_dim, latent_dims, sort_k, c1, c2, kw2, out_dim, hidden,
                num_class):
    ks = iter(jax.random.split(key, 32))

    def p(shape):
        return 0.1 * jax.random.normal(next(ks), shape, jnp.float32)

    gconv = []
    fin = feat_dim
    for fout in latent_dims:                  # conv_params[i]: Linear(fin, fout)
        gconv.append((p((fin, fout)), p((1, fout))))
        fin = fout

    D = sum(latent_dims)                      # total_latent_dim
    l1 = sort_k // 2                          # after MaxPool1d(2, 2)
    l2 = l1 - kw2 + 1                         # after Conv1d(C1, C2, kw2)

    w1 = p((D, c1))              # Conv1d(1, C1, D, D) weight (C1,1,D), stored transposed
    b1 = p((1, c1))
    w2f = p((kw2 * c1, c2))      # Conv1d(C1, C2, kw2) weight (C2,C1,kw2), tap-major rows
    b2 = p((1, c2))
    wo = p((l2 * c2, out_dim))   # out_params Linear(C2*L2, out_dim), rows time-major
    bo = p((1, out_dim))

    wm1 = p((out_dim, hidden))   # h1_weights
    bm1 = p((1, hidden))
    wm2 = p((hidden, num_class))  # h2_weights
    bm2 = p((1, num_class))

    return dict(
        gconv=gconv,
        readout=(w1, b1, w2f, b2, wo, bo),
        mlp=(wm1, bm1, wm2, bm2),
    )


if __name__ == "__main__":
    # small config consistent with the module's constructor
    B, N = 2, 16                 # 2 graphs, 16 nodes each
    feat_dim = 8                 # one-hot node-tag dimension (attr_dim=0, edge_feat_dim=0)
    latent_dims = (8, 8, 8, 1)   # cmd_args.latent_dim
    sort_k = 12                  # cmd_args.sortpooling_k
    c1, c2, kw2 = 16, 32, 5      # conv1d_channels / conv1d_kws[1]
    out_dim = 32                 # cmd_args.out_dim (> 0 -> out_params Linear used)
    hidden = 16                  # cmd_args.hidden
    num_class = 3                # cmd_args.num_class

    key = jax.random.PRNGKey(0)
    k_adj, k_tag, k_lab, k_par = jax.random.split(key, 4)

    # symmetric 0/1 adjacency, zero diagonal; bf16 is exact for 0/1 (halves HBM/VMEM)
    up = (jax.random.uniform(k_adj, (B, N, N)) < 0.3).astype(jnp.float32)
    up = jnp.triu(up, 1)
    adj = up + jnp.transpose(up, (0, 2, 1))
    adj_bf16 = adj.astype(jnp.bfloat16)

    # one-hot node-tag features (PrepareFeatureLabel scatter), batched densely
    tags = jax.random.randint(k_tag, (B, N), 0, feat_dim)
    node_feat = jax.nn.one_hot(tags, feat_dim, dtype=jnp.float32)

    labels = jax.random.randint(k_lab, (B,), 0, num_class)

    params = init_params(k_par, feat_dim, latent_dims, sort_k, c1, c2, kw2,
                         out_dim, hidden, num_class)
    # layout plumbing hoisted out of the per-step path (once per parameter set)
    params["readout_prepared"] = prepare_readout_params(params["readout"])

    fwd = jax.jit(lambda a, x, y: classifier_forward(params, a, x, y, sort_k))
    logits, loss, acc = fwd(adj_bf16, node_feat, labels)
    jax.block_until_ready((logits, loss, acc))
    print("KERNEL_OK")
</pallas_src>

<mosaic_0001>
module attributes {stable_mosaic.version = 11 : i64} {
  func.func @_gconv_fused_kernel(%arg0: i32, %arg1: memref<1x16x16xbf16, #tpu.memory_space<vmem>>, %arg2: memref<1x16x8xf32, #tpu.memory_space<vmem>>, %arg3: memref<8x8xf32, #tpu.memory_space<vmem>>, %arg4: memref<1x8xf32, #tpu.memory_space<vmem>>, %arg5: memref<8x8xf32, #tpu.memory_space<vmem>>, %arg6: memref<1x8xf32, #tpu.memory_space<vmem>>, %arg7: memref<8x8xf32, #tpu.memory_space<vmem>>, %arg8: memref<1x8xf32, #tpu.memory_space<vmem>>, %arg9: memref<8x1xf32, #tpu.memory_space<vmem>>, %arg10: memref<1x1xf32, #tpu.memory_space<vmem>>, %arg11: memref<1x16x128xf32, #tpu.memory_space<vmem>>) attributes {dimension_semantics = [#tpu.dimension_semantics<parallel>], iteration_bounds = array<i64: 2>, scalar_prefetch = 0 : i64, scratch_operands = 0 : i64, tpu.core_type = #tpu.core_type<tc>, window_params = [{transform_indices = @transform_0, window_bounds = array<i64: 1, 16, 16>}, {transform_indices = @transform_1, window_bounds = array<i64: 1, 16, 8>}, {pipeline_mode = #tpu.pipeline_mode<synchronous>, transform_indices = @transform_2, window_bounds = array<i64: 8, 8>}, {pipeline_mode = #tpu.pipeline_mode<synchronous>, transform_indices = @transform_3, window_bounds = array<i64: 1, 8>}, {pipeline_mode = #tpu.pipeline_mode<synchronous>, transform_indices = @transform_4, window_bounds = array<i64: 8, 8>}, {pipeline_mode = #tpu.pipeline_mode<synchronous>, transform_indices = @transform_5, window_bounds = array<i64: 1, 8>}, {pipeline_mode = #tpu.pipeline_mode<synchronous>, transform_indices = @transform_6, window_bounds = array<i64: 8, 8>}, {pipeline_mode = #tpu.pipeline_mode<synchronous>, transform_indices = @transform_7, window_bounds = array<i64: 1, 8>}, {pipeline_mode = #tpu.pipeline_mode<synchronous>, transform_indices = @transform_8, window_bounds = array<i64: 8, 1>}, {pipeline_mode = #tpu.pipeline_mode<synchronous>, transform_indices = @transform_9, window_bounds = array<i64: 1, 1>}, {transform_indices = @transform_10, window_bounds = array<i64: 1, 16, 128>}]} {
    %c0 = arith.constant 0 : index
    %c0_0 = arith.constant 0 : index
    %c0_1 = arith.constant 0 : index
    %0 = vector.load %arg1[%c0, %c0_0, %c0_1] : memref<1x16x16xbf16, #tpu.memory_space<vmem>>, vector<1x16x16xbf16>
    %1 = vector.shape_cast %0 : vector<1x16x16xbf16> to vector<16x16xbf16>
    %c0_2 = arith.constant 0 : index
    %c0_3 = arith.constant 0 : index
    %c0_4 = arith.constant 0 : index
    %2 = vector.load %arg2[%c0_2, %c0_3, %c0_4] : memref<1x16x8xf32, #tpu.memory_space<vmem>>, vector<1x16x8xf32>
    %3 = vector.shape_cast %2 : vector<1x16x8xf32> to vector<16x8xf32>
    %4 = arith.extf %1 : vector<16x16xbf16> to vector<16x16xf32>
    %cst = arith.constant dense<0.000000e+00> : vector<16xf32>
    %5 = vector.multi_reduction <add>, %4, %cst [1] : vector<16x16xf32> to vector<16xf32>
    %6 = vector.shape_cast %5 : vector<16xf32> to vector<16x1xf32>
    %cst_5 = arith.constant 1.000000e+00 : f32
    %7 = vector.broadcast %cst_5 : f32 to vector<16x1xf32>
    %8 = arith.addf %6, %7 : vector<16x1xf32>
    %cst_6 = arith.constant 1.000000e+00 : f32
    %9 = vector.broadcast %cst_6 : f32 to vector<16x1xf32>
    %10 = arith.divf %9, %8 : vector<16x1xf32>
    %11 = arith.truncf %3 : vector<16x8xf32> to vector<16x8xbf16>
    %cst_7 = arith.constant dense<0.000000e+00> : vector<16x8xf32>
    %12 = tpu.matmul %1, %11, %cst_7 {dimension_numbers = #tpu.dot_dimension_numbers<[1], [0], [0], [1], [0, 0, 1, 1], [], []>} : vector<16x16xbf16>, vector<16x8xbf16>, vector<16x8xf32> -> vector<16x8xf32>
    %13 = arith.addf %12, %3 : vector<16x8xf32>
    %14 = arith.truncf %13 : vector<16x8xf32> to vector<16x8xbf16>
    %c0_8 = arith.constant 0 : index
    %c0_9 = arith.constant 0 : index
    %15 = vector.load %arg3[%c0_8, %c0_9] : memref<8x8xf32, #tpu.memory_space<vmem>>, vector<8x8xf32>
    %16 = arith.truncf %15 : vector<8x8xf32> to vector<8x8xbf16>
    %cst_10 = arith.constant dense<0.000000e+00> : vector<16x8xf32>
    %17 = tpu.matmul %14, %16, %cst_10 {dimension_numbers = #tpu.dot_dimension_numbers<[1], [0], [0], [1], [0, 0, 1, 1], [], []>} : vector<16x8xbf16>, vector<8x8xbf16>, vector<16x8xf32> -> vector<16x8xf32>
    %c0_11 = arith.constant 0 : index
    %c0_12 = arith.constant 0 : index
    %18 = vector.load %arg4[%c0_11, %c0_12] : memref<1x8xf32, #tpu.memory_space<vmem>>, vector<1x8xf32>
    %19 = vector.broadcast %18 : vector<1x8xf32> to vector<16x8xf32>
    %20 = arith.addf %17, %19 : vector<16x8xf32>
    %21 = vector.broadcast %10 : vector<16x1xf32> to vector<16x8xf32>
    %22 = arith.mulf %20, %21 : vector<16x8xf32>
    %23 = math.tanh %22 : vector<16x8xf32>
    %24 = arith.truncf %23 : vector<16x8xf32> to vector<16x8xbf16>
    %cst_13 = arith.constant dense<0.000000e+00> : vector<16x8xf32>
    %25 = tpu.matmul %1, %24, %cst_13 {dimension_numbers = #tpu.dot_dimension_numbers<[1], [0], [0], [1], [0, 0, 1, 1], [], []>} : vector<16x16xbf16>, vector<16x8xbf16>, vector<16x8xf32> -> vector<16x8xf32>
    %26 = arith.addf %25, %23 : vector<16x8xf32>
    %27 = arith.truncf %26 : vector<16x8xf32> to vector<16x8xbf16>
    %c0_14 = arith.constant 0 : index
    %c0_15 = arith.constant 0 : index
    %28 = vector.load %arg5[%c0_14, %c0_15] : memref<8x8xf32, #tpu.memory_space<vmem>>, vector<8x8xf32>
    %29 = arith.truncf %28 : vector<8x8xf32> to vector<8x8xbf16>
    %cst_16 = arith.constant dense<0.000000e+00> : vector<16x8xf32>
    %30 = tpu.matmul %27, %29, %cst_16 {dimension_numbers = #tpu.dot_dimension_numbers<[1], [0], [0], [1], [0, 0, 1, 1], [], []>} : vector<16x8xbf16>, vector<8x8xbf16>, vector<16x8xf32> -> vector<16x8xf32>
    %c0_17 = arith.constant 0 : index
    %c0_18 = arith.constant 0 : index
    %31 = vector.load %arg6[%c0_17, %c0_18] : memref<1x8xf32, #tpu.memory_space<vmem>>, vector<1x8xf32>
    %32 = vector.broadcast %31 : vector<1x8xf32> to vector<16x8xf32>
    %33 = arith.addf %30, %32 : vector<16x8xf32>
    %34 = vector.broadcast %10 : vector<16x1xf32> to vector<16x8xf32>
    %35 = arith.mulf %33, %34 : vector<16x8xf32>
    %36 = math.tanh %35 : vector<16x8xf32>
    %37 = arith.truncf %36 : vector<16x8xf32> to vector<16x8xbf16>
    %cst_19 = arith.constant dense<0.000000e+00> : vector<16x8xf32>
    %38 = tpu.matmul %1, %37, %cst_19 {dimension_numbers = #tpu.dot_dimension_numbers<[1], [0], [0], [1], [0, 0, 1, 1], [], []>} : vector<16x16xbf16>, vector<16x8xbf16>, vector<16x8xf32> -> vector<16x8xf32>
    %39 = arith.addf %38, %36 : vector<16x8xf32>
    %40 = arith.truncf %39 : vector<16x8xf32> to vector<16x8xbf16>
    %c0_20 = arith.constant 0 : index
    %c0_21 = arith.constant 0 : index
    %41 = vector.load %arg7[%c0_20, %c0_21] : memref<8x8xf32, #tpu.memory_space<vmem>>, vector<8x8xf32>
    %42 = arith.truncf %41 : vector<8x8xf32> to vector<8x8xbf16>
    %cst_22 = arith.constant dense<0.000000e+00> : vector<16x8xf32>
    %43 = tpu.matmul %40, %42, %cst_22 {dimension_numbers = #tpu.dot_dimension_numbers<[1], [0], [0], [1], [0, 0, 1, 1], [], []>} : vector<16x8xbf16>, vector<8x8xbf16>, vector<16x8xf32> -> vector<16x8xf32>
    %c0_23 = arith.constant 0 : index
    %c0_24 = arith.constant 0 : index
    %44 = vector.load %arg8[%c0_23, %c0_24] : memref<1x8xf32, #tpu.memory_space<vmem>>, vector<1x8xf32>
    %45 = vector.broadcast %44 : vector<1x8xf32> to vector<16x8xf32>
    %46 = arith.addf %43, %45 : vector<16x8xf32>
    %47 = vector.broadcast %10 : vector<16x1xf32> to vector<16x8xf32>
    %48 = arith.mulf %46, %47 : vector<16x8xf32>
    %49 = math.tanh %48 : vector<16x8xf32>
    %50 = arith.truncf %49 : vector<16x8xf32> to vector<16x8xbf16>
    %cst_25 = arith.constant dense<0.000000e+00> : vector<16x8xf32>
    %51 = tpu.matmul %1, %50, %cst_25 {dimension_numbers = #tpu.dot_dimension_numbers<[1], [0], [0], [1], [0, 0, 1, 1], [], []>} : vector<16x16xbf16>, vector<16x8xbf16>, vector<16x8xf32> -> vector<16x8xf32>
    %52 = arith.addf %51, %49 : vector<16x8xf32>
    %53 = arith.truncf %52 : vector<16x8xf32> to vector<16x8xbf16>
    %c0_26 = arith.constant 0 : index
    %c0_27 = arith.constant 0 : index
    %54 = vector.load %arg9[%c0_26, %c0_27] : memref<8x1xf32, #tpu.memory_space<vmem>>, vector<8x1xf32>
    %55 = arith.truncf %54 : vector<8x1xf32> to vector<8x1xbf16>
    %cst_28 = arith.constant dense<0.000000e+00> : vector<16x1xf32>
    %56 = tpu.matmul %53, %55, %cst_28 {dimension_numbers = #tpu.dot_dimension_numbers<[1], [0], [0], [1], [0, 0, 1, 1], [], []>} : vector<16x8xbf16>, vector<8x1xbf16>, vector<16x1xf32> -> vector<16x1xf32>
    %c0_29 = arith.constant 0 : index
    %c0_30 = arith.constant 0 : index
    %57 = vector.load %arg10[%c0_29, %c0_30] : memref<1x1xf32, #tpu.memory_space<vmem>>, vector<1x1xf32>
    %58 = vector.broadcast %57 : vector<1x1xf32> to vector<16x1xf32>
    %59 = arith.addf %56, %58 : vector<16x1xf32>
    %60 = arith.mulf %59, %10 : vector<16x1xf32>
    %61 = math.tanh %60 : vector<16x1xf32>
    %cst_31 = arith.constant 0.000000e+00 : f32
    %62 = vector.broadcast %cst_31 : f32 to vector<16x103xf32>
    %63 = tpu.concatenate %23, %36, %49, %61, %62 in 1 : vector<16x8xf32>, vector<16x8xf32>, vector<16x8xf32>, vector<16x1xf32>, vector<16x103xf32> -> vector<16x128xf32>
    %c0_32 = arith.constant 0 : index
    %c0_33 = arith.constant 0 : index
    %c0_34 = arith.constant 0 : index
    %64 = vector.load %arg11[%c0_32, %c0_33, %c0_34] : memref<1x16x128xf32, #tpu.memory_space<vmem>>, vector<1x16x128xf32>
    %65 = vector.shape_cast %64 : vector<1x16x128xf32> to vector<16x128xf32>
    %66 = vector.shape_cast %63 : vector<16x128xf32> to vector<1x16x128xf32>
    tpu.vector_store %arg11[%c0_32, %c0_33, %c0_34], %66 {strides = array<i32>} : memref<1x16x128xf32, #tpu.memory_space<vmem>>, vector<1x16x128xf32>,
    return
  }
  func.func @transform_0(%arg0: i32) -> (i32, i32, i32) {
    %c0_i32 = arith.constant 0 : i32
    %c0_i32_0 = arith.constant 0 : i32
    %c0_i32_1 = arith.constant 0 : i32
    return %arg0, %c0_i32, %c0_i32_0 : i32, i32, i32
  }
  func.func @transform_1(%arg0: i32) -> (i32, i32, i32) {
    %c0_i32 = arith.constant 0 : i32
    %c0_i32_0 = arith.constant 0 : i32
    %c0_i32_1 = arith.constant 0 : i32
    return %arg0, %c0_i32, %c0_i32_0 : i32, i32, i32
  }
  func.func @transform_2(%arg0: i32) -> (i32, i32) {
    %c0_i32 = arith.constant 0 : i32
    %c0_i32_0 = arith.constant 0 : i32
    %c0_i32_1 = arith.constant 0 : i32
    return %c0_i32, %c0_i32_0 : i32, i32
  }
  func.func @transform_3(%arg0: i32) -> (i32, i32) {
    %c0_i32 = arith.constant 0 : i32
    %c0_i32_0 = arith.constant 0 : i32
    %c0_i32_1 = arith.constant 0 : i32
    return %c0_i32, %c0_i32_0 : i32, i32
  }
  func.func @transform_4(%arg0: i32) -> (i32, i32) {
    %c0_i32 = arith.constant 0 : i32
    %c0_i32_0 = arith.constant 0 : i32
    %c0_i32_1 = arith.constant 0 : i32
    return %c0_i32, %c0_i32_0 : i32, i32
  }
  func.func @transform_5(%arg0: i32) -> (i32, i32) {
    %c0_i32 = arith.constant 0 : i32
    %c0_i32_0 = arith.constant 0 : i32
    %c0_i32_1 = arith.constant 0 : i32
    return %c0_i32, %c0_i32_0 : i32, i32
  }
  func.func @transform_6(%arg0: i32) -> (i32, i32) {
    %c0_i32 = arith.constant 0 : i32
    %c0_i32_0 = arith.constant 0 : i32
    %c0_i32_1 = arith.constant 0 : i32
    return %c0_i32, %c0_i32_0 : i32, i32
  }
  func.func @transform_7(%arg0: i32) -> (i32, i32) {
    %c0_i32 = arith.constant 0 : i32
    %c0_i32_0 = arith.constant 0 : i32
    %c0_i32_1 = arith.constant 0 : i32
    return %c0_i32, %c0_i32_0 : i32, i32
  }
  func.func @transform_8(%arg0: i32) -> (i32, i32) {
    %c0_i32 = arith.constant 0 : i32
    %c0_i32_0 = arith.constant 0 : i32
    %c0_i32_1 = arith.constant 0 : i32
    return %c0_i32, %c0_i32_0 : i32, i32
  }
  func.func @transform_9(%arg0: i32) -> (i32, i32) {
    %c0_i32 = arith.constant 0 : i32
    %c0_i32_0 = arith.constant 0 : i32
    %c0_i32_1 = arith.constant 0 : i32
    return %c0_i32, %c0_i32_0 : i32, i32
  }
  func.func @transform_10(%arg0: i32) -> (i32, i32, i32) {
    %c0_i32 = arith.constant 0 : i32
    %c0_i32_0 = arith.constant 0 : i32
    %c0_i32_1 = arith.constant 0 : i32
    return %arg0, %c0_i32, %c0_i32_0 : i32, i32, i32
  }
}

module attributes {stable_mosaic.version = 11 : i64} {
  func.func @_readout_mlp_kernel(%arg0: i32, %arg1: memref<1x6x50xf32, #tpu.memory_space<vmem>>, %arg2: memref<50x32xf32, #tpu.memory_space<vmem>>, %arg3: memref<1x32xf32, #tpu.memory_space<vmem>>, %arg4: memref<80x32xf32, #tpu.memory_space<vmem>>, %arg5: memref<1x32xf32, #tpu.memory_space<vmem>>, %arg6: memref<64x32xf32, #tpu.memory_space<vmem>>, %arg7: memref<1x32xf32, #tpu.memory_space<vmem>>, %arg8: memref<32x16xf32, #tpu.memory_space<vmem>>, %arg9: memref<1x16xf32, #tpu.memory_space<vmem>>, %arg10: memref<16x3xf32, #tpu.memory_space<vmem>>, %arg11: memref<1x3xf32, #tpu.memory_space<vmem>>, %arg12: memref<1x1x3xf32, #tpu.memory_space<vmem>>) attributes {dimension_semantics = [#tpu.dimension_semantics<parallel>], iteration_bounds = array<i64: 2>, scalar_prefetch = 0 : i64, scratch_operands = 0 : i64, tpu.core_type = #tpu.core_type<tc>, window_params = [{transform_indices = @transform_0, window_bounds = array<i64: 1, 6, 50>}, {pipeline_mode = #tpu.pipeline_mode<synchronous>, transform_indices = @transform_1, window_bounds = array<i64: 50, 32>}, {pipeline_mode = #tpu.pipeline_mode<synchronous>, transform_indices = @transform_2, window_bounds = array<i64: 1, 32>}, {pipeline_mode = #tpu.pipeline_mode<synchronous>, transform_indices = @transform_3, window_bounds = array<i64: 80, 32>}, {pipeline_mode = #tpu.pipeline_mode<synchronous>, transform_indices = @transform_4, window_bounds = array<i64: 1, 32>}, {pipeline_mode = #tpu.pipeline_mode<synchronous>, transform_indices = @transform_5, window_bounds = array<i64: 64, 32>}, {pipeline_mode = #tpu.pipeline_mode<synchronous>, transform_indices = @transform_6, window_bounds = array<i64: 1, 32>}, {pipeline_mode = #tpu.pipeline_mode<synchronous>, transform_indices = @transform_7, window_bounds = array<i64: 32, 16>}, {pipeline_mode = #tpu.pipeline_mode<synchronous>, transform_indices = @transform_8, window_bounds = array<i64: 1, 16>}, {pipeline_mode = #tpu.pipeline_mode<synchronous>, transform_indices = @transform_9, window_bounds = array<i64: 16, 3>}, {pipeline_mode = #tpu.pipeline_mode<synchronous>, transform_indices = @transform_10, window_bounds = array<i64: 1, 3>}, {transform_indices = @transform_11, window_bounds = array<i64: 1, 1, 3>}]} {
    %c0 = arith.constant 0 : index
    %c0_0 = arith.constant 0 : index
    %c0_1 = arith.constant 0 : index
    %0 = vector.load %arg1[%c0, %c0_0, %c0_1] : memref<1x6x50xf32, #tpu.memory_space<vmem>>, vector<1x6x50xf32>
    %1 = vector.shape_cast %0 : vector<1x6x50xf32> to vector<6x50xf32>
    %2 = arith.truncf %1 : vector<6x50xf32> to vector<6x50xbf16>
    %c0_2 = arith.constant 0 : index
    %c0_3 = arith.constant 0 : index
    %3 = vector.load %arg2[%c0_2, %c0_3] : memref<50x32xf32, #tpu.memory_space<vmem>>, vector<50x32xf32>
    %4 = arith.truncf %3 : vector<50x32xf32> to vector<50x32xbf16>
    %cst = arith.constant dense<0.000000e+00> : vector<6x32xf32>
    %5 = tpu.matmul %2, %4, %cst {dimension_numbers = #tpu.dot_dimension_numbers<[1], [0], [0], [1], [0, 0, 1, 1], [], []>} : vector<6x50xbf16>, vector<50x32xbf16>, vector<6x32xf32> -> vector<6x32xf32>
    %c0_4 = arith.constant 0 : index
    %c0_5 = arith.constant 0 : index
    %6 = vector.load %arg3[%c0_4, %c0_5] : memref<1x32xf32, #tpu.memory_space<vmem>>, vector<1x32xf32>
    %7 = vector.broadcast %6 : vector<1x32xf32> to vector<6x32xf32>
    %8 = arith.addf %5, %7 : vector<6x32xf32>
    %cst_6 = arith.constant 0.000000e+00 : f32
    %9 = vector.broadcast %cst_6 : f32 to vector<6x32xf32>
    %10 = arith.maximumf %8, %9 : vector<6x32xf32>
    %11 = vector.extract_strided_slice %10 {offsets = [0, 0], sizes = [6, 16], strides = [1, 1]} : vector<6x32xf32> to vector<6x16xf32>
    %12 = vector.extract_strided_slice %10 {offsets = [0, 16], sizes = [6, 16], strides = [1, 1]} : vector<6x32xf32> to vector<6x16xf32>
    %13 = arith.maximumf %11, %12 : vector<6x16xf32>
    %14 = vector.extract_strided_slice %13 {offsets = [0, 0], sizes = [2, 16], strides = [1, 1]} : vector<6x16xf32> to vector<2x16xf32>
    %15 = vector.extract_strided_slice %13 {offsets = [1, 0], sizes = [2, 16], strides = [1, 1]} : vector<6x16xf32> to vector<2x16xf32>
    %16 = vector.extract_strided_slice %13 {offsets = [2, 0], sizes = [2, 16], strides = [1, 1]} : vector<6x16xf32> to vector<2x16xf32>
    %17 = vector.extract_strided_slice %13 {offsets = [3, 0], sizes = [2, 16], strides = [1, 1]} : vector<6x16xf32> to vector<2x16xf32>
    %18 = vector.extract_strided_slice %13 {offsets = [4, 0], sizes = [2, 16], strides = [1, 1]} : vector<6x16xf32> to vector<2x16xf32>
    %19 = tpu.concatenate %14, %15, %16, %17, %18 in 1 : vector<2x16xf32>, vector<2x16xf32>, vector<2x16xf32>, vector<2x16xf32>, vector<2x16xf32> -> vector<2x80xf32>
    %20 = arith.truncf %19 : vector<2x80xf32> to vector<2x80xbf16>
    %c0_7 = arith.constant 0 : index
    %c0_8 = arith.constant 0 : index
    %21 = vector.load %arg4[%c0_7, %c0_8] : memref<80x32xf32, #tpu.memory_space<vmem>>, vector<80x32xf32>
    %22 = arith.truncf %21 : vector<80x32xf32> to vector<80x32xbf16>
    %cst_9 = arith.constant dense<0.000000e+00> : vector<2x32xf32>
    %23 = tpu.matmul %20, %22, %cst_9 {dimension_numbers = #tpu.dot_dimension_numbers<[1], [0], [0], [1], [0, 0, 1, 1], [], []>} : vector<2x80xbf16>, vector<80x32xbf16>, vector<2x32xf32> -> vector<2x32xf32>
    %c0_10 = arith.constant 0 : index
    %c0_11 = arith.constant 0 : index
    %24 = vector.load %arg5[%c0_10, %c0_11] : memref<1x32xf32, #tpu.memory_space<vmem>>, vector<1x32xf32>
    %25 = vector.broadcast %24 : vector<1x32xf32> to vector<2x32xf32>
    %26 = arith.addf %23, %25 : vector<2x32xf32>
    %cst_12 = arith.constant 0.000000e+00 : f32
    %27 = vector.broadcast %cst_12 : f32 to vector<2x32xf32>
    %28 = arith.maximumf %26, %27 : vector<2x32xf32>
    %29 = vector.extract_strided_slice %28 {offsets = [0, 0], sizes = [1, 32], strides = [1, 1]} : vector<2x32xf32> to vector<1x32xf32>
    %30 = vector.extract_strided_slice %28 {offsets = [1, 0], sizes = [1, 32], strides = [1, 1]} : vector<2x32xf32> to vector<1x32xf32>
    %31 = tpu.concatenate %29, %30 in 1 : vector<1x32xf32>, vector<1x32xf32> -> vector<1x64xf32>
    %32 = arith.truncf %31 : vector<1x64xf32> to vector<1x64xbf16>
    %c0_13 = arith.constant 0 : index
    %c0_14 = arith.constant 0 : index
    %33 = vector.load %arg6[%c0_13, %c0_14] : memref<64x32xf32, #tpu.memory_space<vmem>>, vector<64x32xf32>
    %34 = arith.truncf %33 : vector<64x32xf32> to vector<64x32xbf16>
    %cst_15 = arith.constant dense<0.000000e+00> : vector<1x32xf32>
    %35 = tpu.matmul %32, %34, %cst_15 {dimension_numbers = #tpu.dot_dimension_numbers<[1], [0], [0], [1], [0, 0, 1, 1], [], []>} : vector<1x64xbf16>, vector<64x32xbf16>, vector<1x32xf32> -> vector<1x32xf32>
    %c0_16 = arith.constant 0 : index
    %c0_17 = arith.constant 0 : index
    %36 = vector.load %arg7[%c0_16, %c0_17] : memref<1x32xf32, #tpu.memory_space<vmem>>, vector<1x32xf32>
    %37 = arith.addf %35, %36 : vector<1x32xf32>
    %cst_18 = arith.constant 0.000000e+00 : f32
    %38 = vector.broadcast %cst_18 : f32 to vector<1x32xf32>
    %39 = arith.maximumf %37, %38 : vector<1x32xf32>
    %40 = arith.truncf %39 : vector<1x32xf32> to vector<1x32xbf16>
    %c0_19 = arith.constant 0 : index
    %c0_20 = arith.constant 0 : index
    %41 = vector.load %arg8[%c0_19, %c0_20] : memref<32x16xf32, #tpu.memory_space<vmem>>, vector<32x16xf32>
    %42 = arith.truncf %41 : vector<32x16xf32> to vector<32x16xbf16>
    %cst_21 = arith.constant dense<0.000000e+00> : vector<1x16xf32>
    %43 = tpu.matmul %40, %42, %cst_21 {dimension_numbers = #tpu.dot_dimension_numbers<[1], [0], [0], [1], [0, 0, 1, 1], [], []>} : vector<1x32xbf16>, vector<32x16xbf16>, vector<1x16xf32> -> vector<1x16xf32>
    %c0_22 = arith.constant 0 : index
    %c0_23 = arith.constant 0 : index
    %44 = vector.load %arg9[%c0_22, %c0_23] : memref<1x16xf32, #tpu.memory_space<vmem>>, vector<1x16xf32>
    %45 = arith.addf %43, %44 : vector<1x16xf32>
    %cst_24 = arith.constant 0.000000e+00 : f32
    %46 = vector.broadcast %cst_24 : f32 to vector<1x16xf32>
    %47 = arith.maximumf %45, %46 : vector<1x16xf32>
    %48 = arith.truncf %47 : vector<1x16xf32> to vector<1x16xbf16>
    %c0_25 = arith.constant 0 : index
    %c0_26 = arith.constant 0 : index
    %49 = vector.load %arg10[%c0_25, %c0_26] : memref<16x3xf32, #tpu.memory_space<vmem>>, vector<16x3xf32>
    %50 = arith.truncf %49 : vector<16x3xf32> to vector<16x3xbf16>
    %cst_27 = arith.constant dense<0.000000e+00> : vector<1x3xf32>
    %51 = tpu.matmul %48, %50, %cst_27 {dimension_numbers = #tpu.dot_dimension_numbers<[1], [0], [0], [1], [0, 0, 1, 1], [], []>} : vector<1x16xbf16>, vector<16x3xbf16>, vector<1x3xf32> -> vector<1x3xf32>
    %c0_28 = arith.constant 0 : index
    %c0_29 = arith.constant 0 : index
    %52 = vector.load %arg11[%c0_28, %c0_29] : memref<1x3xf32, #tpu.memory_space<vmem>>, vector<1x3xf32>
    %53 = arith.addf %51, %52 : vector<1x3xf32>
    %cst_30 = arith.constant dense<0xFF800000> : vector<1xf32>
    %54 = vector.multi_reduction <maximumf>, %53, %cst_30 [1] : vector<1x3xf32> to vector<1xf32>
    %55 = vector.shape_cast %54 : vector<1xf32> to vector<1x1xf32>
    %56 = vector.broadcast %55 : vector<1x1xf32> to vector<1x3xf32>
    %57 = arith.subf %53, %56 : vector<1x3xf32>
    %58 = math.exp %57 : vector<1x3xf32>
    %cst_31 = arith.constant dense<0.000000e+00> : vector<1xf32>
    %59 = vector.multi_reduction <add>, %58, %cst_31 [1] : vector<1x3xf32> to vector<1xf32>
    %60 = vector.shape_cast %59 : vector<1xf32> to vector<1x1xf32>
    %61 = math.log %60 : vector<1x1xf32>
    %62 = vector.broadcast %61 : vector<1x1xf32> to vector<1x3xf32>
    %63 = arith.subf %57, %62 : vector<1x3xf32>
    %c0_32 = arith.constant 0 : index
    %c0_33 = arith.constant 0 : index
    %c0_34 = arith.constant 0 : index
    %64 = vector.load %arg12[%c0_32, %c0_33, %c0_34] : memref<1x1x3xf32, #tpu.memory_space<vmem>>, vector<1x1x3xf32>
    %65 = vector.shape_cast %64 : vector<1x1x3xf32> to vector<1x3xf32>
    %66 = vector.shape_cast %63 : vector<1x3xf32> to vector<1x1x3xf32>
    tpu.vector_store %arg12[%c0_32, %c0_33, %c0_34], %66 {strides = array<i32>} : memref<1x1x3xf32, #tpu.memory_space<vmem>>, vector<1x1x3xf32>,
    return
  }
  func.func @transform_0(%arg0: i32) -> (i32, i32, i32) {
    %c0_i32 = arith.constant 0 : i32
    %c0_i32_0 = arith.constant 0 : i32
    %c0_i32_1 = arith.constant 0 : i32
    return %arg0, %c0_i32, %c0_i32_0 : i32, i32, i32
  }
  func.func @transform_1(%arg0: i32) -> (i32, i32) {
    %c0_i32 = arith.constant 0 : i32
    %c0_i32_0 = arith.constant 0 : i32
    %c0_i32_1 = arith.constant 0 : i32
    return %c0_i32, %c0_i32_0 : i32, i32
  }
  func.func @transform_2(%arg0: i32) -> (i32, i32) {
    %c0_i32 = arith.constant 0 : i32
    %c0_i32_0 = arith.constant 0 : i32
    %c0_i32_1 = arith.constant 0 : i32
    return %c0_i32, %c0_i32_0 : i32, i32
  }
  func.func @transform_3(%arg0: i32) -> (i32, i32) {
    %c0_i32 = arith.constant 0 : i32
    %c0_i32_0 = arith.constant 0 : i32
    %c0_i32_1 = arith.constant 0 : i32
    return %c0_i32, %c0_i32_0 : i32, i32
  }
  func.func @transform_4(%arg0: i32) -> (i32, i32) {
    %c0_i32 = arith.constant 0 : i32
    %c0_i32_0 = arith.constant 0 : i32
    %c0_i32_1 = arith.constant 0 : i32
    return %c0_i32, %c0_i32_0 : i32, i32
  }
  func.func @transform_5(%arg0: i32) -> (i32, i32) {
    %c0_i32 = arith.constant 0 : i32
    %c0_i32_0 = arith.constant 0 : i32
    %c0_i32_1 = arith.constant 0 : i32
    return %c0_i32, %c0_i32_0 : i32, i32
  }
  func.func @transform_6(%arg0: i32) -> (i32, i32) {
    %c0_i32 = arith.constant 0 : i32
    %c0_i32_0 = arith.constant 0 : i32
    %c0_i32_1 = arith.constant 0 : i32
    return %c0_i32, %c0_i32_0 : i32, i32
  }
  func.func @transform_7(%arg0: i32) -> (i32, i32) {
    %c0_i32 = arith.constant 0 : i32
    %c0_i32_0 = arith.constant 0 : i32
    %c0_i32_1 = arith.constant 0 : i32
    return %c0_i32, %c0_i32_0 : i32, i32
  }
  func.func @transform_8(%arg0: i32) -> (i32, i32) {
    %c0_i32 = arith.constant 0 : i32
    %c0_i32_0 = arith.constant 0 : i32
    %c0_i32_1 = arith.constant 0 : i32
    return %c0_i32, %c0_i32_0 : i32, i32
  }
  func.func @transform_9(%arg0: i32) -> (i32, i32) {
    %c0_i32 = arith.constant 0 : i32
    %c0_i32_0 = arith.constant 0 : i32
    %c0_i32_1 = arith.constant 0 : i32
    return %c0_i32, %c0_i32_0 : i32, i32
  }
  func.func @transform_10(%arg0: i32) -> (i32, i32) {
    %c0_i32 = arith.constant 0 : i32
    %c0_i32_0 = arith.constant 0 : i32
    %c0_i32_1 = arith.constant 0 : i32
    return %c0_i32, %c0_i32_0 : i32, i32
  }
  func.func @transform_11(%arg0: i32) -> (i32, i32, i32) {
    %c0_i32 = arith.constant 0 : i32
    %c0_i32_0 = arith.constant 0 : i32
    %c0_i32_1 = arith.constant 0 : i32
    return %arg0, %c0_i32, %c0_i32_0 : i32, i32, i32
  }
}

</mosaic_0001>

<llo_original>
// kernel: _lambda_.2
$region0: #{_lambda_.2}
  #allocation0 [shape = 'u32[]', space=smem, size = 0x4, offset = 0x4, fixed_abs, tag = 'smem constant byte address 0x4 - core index']
  #allocation1 [shape = 'u32[144,128]{1,0:T(1,128)}', space=vmem, size = 0x12000, scoped, tag = 'internal scratch']
  #allocation2 [shape = 'f32[1,1]{1,0:T(1,128)S(1)}', space=vmem, size = 0x200, scoped, tag = 'scoped memory for _lambda_.2']
  %s0 = inlined_call_operand.vmem [shape: bf16[2,16,16], index: 0, kind: input, shape index: {}]
  %s1 = inlined_call_operand.vmem [shape: f32[2,16,8], index: 1, kind: input, shape index: {}]
  %s2 = inlined_call_operand.vmem [shape: f32[8,8], index: 2, kind: input, shape index: {}]
  %s3 = inlined_call_operand.vmem [shape: f32[1,8], index: 3, kind: input, shape index: {}]
  %s4 = inlined_call_operand.vmem [shape: f32[8,8], index: 4, kind: input, shape index: {}]
  %s5 = inlined_call_operand.vmem [shape: f32[1,8], index: 5, kind: input, shape index: {}]
  %s6 = inlined_call_operand.vmem [shape: f32[8,8], index: 6, kind: input, shape index: {}]
  %s7 = inlined_call_operand.vmem [shape: f32[1,8], index: 7, kind: input, shape index: {}]
  %s8 = inlined_call_operand.vmem [shape: f32[8,1], index: 8, kind: input, shape index: {}]
  %s9 = inlined_call_operand.<no memory space> [shape: f32[1,1], index: 9, kind: input, shape index: {}]
  %s10 = inlined_call_operand.vmem [shape: f32[2,16,128], index: 10, kind: output, shape index: {}]
  %s11 = sld [smem:[#allocation0]]
  $region73: #{_lambda_.2} parent=0
    _
  %s13 = ssub.s32 1, %s11
  %s14 = scalar_select 0, %s13, %s11
  %v15 = vstv %s9
  %16 = vst [vmem:[#allocation2] sm:$0x1] %v15
  loop: start=0, step=1, limit=4
  $region2: #{_lambda_.2} parent=0 // loop_pre_header
    _
  $region3: #{_lambda_.2} parent=0 // loop_header
    %s18 = sphi 0, %s22
    %p19 = scmp.ge.s32.totalorder %s18, 4
    %s28 = sphi 0, %s30
    %s31 = sphi 0, %s28
    %s32 = sphi 0, %s31
    %s48 = sphi 0, %s32
    %s54 = sphi 0, %s56
    %s57 = sphi 0, %s54
    %s58 = sphi 0, %s57
    %s74 = sphi 0, %s58
    %s78 = sphi 0, %s78
    %s80 = sphi 0, %s78
    %s81 = sphi 0, %s80
    %s95 = sphi 0, %s81
    %s99 = sphi 0, %s99
    %s101 = sphi 0, %s99
    %s102 = sphi 0, %s101
    %s116 = sphi 0, %s102
    %s120 = sphi 0, %s120
    %s122 = sphi 0, %s120
    %s123 = sphi 0, %s122
    %s137 = sphi 0, %s123
    %s141 = sphi 0, %s141
    %s143 = sphi 0, %s141
    %s144 = sphi 0, %s143
    %s158 = sphi 0, %s144
    %s162 = sphi 0, %s162
    %s164 = sphi 0, %s162
    %s165 = sphi 0, %s164
    %s179 = sphi 0, %s165
    %s183 = sphi 0, %s183
    %s185 = sphi 0, %s183
    %s186 = sphi 0, %s185
    %s200 = sphi 0, %s186
    %s204 = sphi 0, %s204
    %s206 = sphi 0, %s204
    %s207 = sphi 0, %s206
    %s221 = sphi 0, %s207
    %s225 = sphi 0, %s225
    %s227 = sphi 0, %s225
    %s228 = sphi 0, %s227
    %s242 = sphi 0, %s228
    %s248 = sphi 0, %s250
    %s251 = sphi 0, %s248
    %s252 = sphi 0, %s251
    %s268 = sphi 0, %s252
  $region4: #{_lambda_.2} parent=0 // loop_header_branch
    %21 = sbr.rel (%p19) target = $region8
  $region5: #{_lambda_.2} parent=0 // loop_body
    %s23 = ssub.s32 %s18, 1
    %s24 = ssub.s32 %s18, 2
    %s25 = sadd.s32 %s18, 1
    %s26 = ssub.s32 %s18, %s25
    %p27 = scmp.eq.s32.totalorder %s26, 0
    %s29 = sadd.s32 %s28, 1
    %s30 = scalar_select %p27, %s28, %s29
    %p33 = pneg %p27
    %p34 = scmp.eq.s32.totalorder %s18, 1
    %p35 = por %p33, %p34
    %p36 = scmp.ne.s32.totalorder %s28, %s31
    %p37 = scmp.eq.s32.totalorder %s18, 0
    %p38 = por %p36, %p37
    %p39 = scmp.ne.s32.totalorder %s28, %s31
    %p40 = scmp.eq.s32.totalorder %s23, 1
    %p41 = por %p39, %p40
    %p42 = scmp.ne.s32.totalorder %s31, %s32
    %p43 = scmp.eq.s32.totalorder %s23, 0
    %p44 = por %p42, %p43
    %p45 = scmp.ne.s32.totalorder %s31, %s32
    %p46 = scmp.eq.s32.totalorder %s24, 1
    %p47 = por %p45, %p46
    %p49 = scmp.ne.s32.totalorder %s32, %s48
    %p50 = scmp.eq.s32.totalorder %s24, 0
    %p51 = por %p49, %p50
    %s52 = ssub.s32 %s18, %s25
    %p53 = scmp.eq.s32.totalorder %s52, 0
    %s55 = sadd.s32 %s54, 1
    %s56 = scalar_select %p53, %s54, %s55
    %p59 = pneg %p53
    %p60 = scmp.eq.s32.totalorder %s18, 1
    %p61 = por %p59, %p60
    %p62 = scmp.ne.s32.totalorder %s54, %s57
    %p63 = scmp.eq.s32.totalorder %s18, 0
    %p64 = por %p62, %p63
    %p65 = scmp.ne.s32.totalorder %s54, %s57
    %p66 = scmp.eq.s32.totalorder %s23, 1
    %p67 = por %p65, %p66
    %p68 = scmp.ne.s32.totalorder %s57, %s58
    %p69 = scmp.eq.s32.totalorder %s23, 0
    %p70 = por %p68, %p69
    %p71 = scmp.ne.s32.totalorder %s57, %s58
    %p72 = scmp.eq.s32.totalorder %s24, 1
    %p73 = por %p71, %p72
    %p75 = scmp.ne.s32.totalorder %s58, %s74
    %p76 = scmp.eq.s32.totalorder %s24, 0
    %p77 = por %p75, %p76
    %s79 = sadd.s32 %s78, 1
    %p82 = scmp.eq.s32.totalorder %s18, 1
    %p83 = scmp.ne.s32.totalorder %s78, %s80
    %p84 = scmp.eq.s32.totalorder %s18, 0
    %p85 = por %p83, %p84
    %p86 = scmp.ne.s32.totalorder %s78, %s80
    %p87 = scmp.eq.s32.totalorder %s23, 1
    %p88 = por %p86, %p87
    %p89 = scmp.ne.s32.totalorder %s80, %s81
    %p90 = scmp.eq.s32.totalorder %s23, 0
    %p91 = por %p89, %p90
    %p92 = scmp.ne.s32.totalorder %s80, %s81
    %p93 = scmp.eq.s32.totalorder %s24, 1
    %p94 = por %p92, %p93
    %p96 = scmp.ne.s32.totalorder %s81, %s95
    %p97 = scmp.eq.s32.totalorder %s24, 0
    %p98 = por %p96, %p97
    %s100 = sadd.s32 %s99, 1
    %p103 = scmp.eq.s32.totalorder %s18, 1
    %p104 = scmp.ne.s32.totalorder %s99, %s101
    %p105 = scmp.eq.s32.totalorder %s18, 0
    %p106 = por %p104, %p105
    %p107 = scmp.ne.s32.totalorder %s99, %s101
    %p108 = scmp.eq.s32.totalorder %s23, 1
    %p109 = por %p107, %p108
    %p110 = scmp.ne.s32.totalorder %s101, %s102
    %p111 = scmp.eq.s32.totalorder %s23, 0
    %p112 = por %p110, %p111
    %p113 = scmp.ne.s32.totalorder %s101, %s102
    %p114 = scmp.eq.s32.totalorder %s24, 1
    %p115 = por %p113, %p114
    %p117 = scmp.ne.s32.totalorder %s102, %s116
    %p118 = scmp.eq.s32.totalorder %s24, 0
    %p119 = por %p117, %p118
    %s121 = sadd.s32 %s120, 1
    %p124 = scmp.eq.s32.totalorder %s18, 1
    %p125 = scmp.ne.s32.totalorder %s120, %s122
    %p126 = scmp.eq.s32.totalorder %s18, 0
    %p127 = por %p125, %p126
    %p128 = scmp.ne.s32.totalorder %s120, %s122
    %p129 = scmp.eq.s32.totalorder %s23, 1
    %p130 = por %p128, %p129
    %p131 = scmp.ne.s32.totalorder %s122, %s123
    %p132 = scmp.eq.s32.totalorder %s23, 0
    %p133 = por %p131, %p132
    %p134 = scmp.ne.s32.totalorder %s122, %s123
    %p135 = scmp.eq.s32.totalorder %s24, 1
    %p136 = por %p134, %p135
    %p138 = scmp.ne.s32.totalorder %s123, %s137
    %p139 = scmp.eq.s32.totalorder %s24, 0
    %p140 = por %p138, %p139
    %s142 = sadd.s32 %s141, 1
    %p145 = scmp.eq.s32.totalorder %s18, 1
    %p146 = scmp.ne.s32.totalorder %s141, %s143
    %p147 = scmp.eq.s32.totalorder %s18, 0
    %p148 = por %p146, %p147
    %p149 = scmp.ne.s32.totalorder %s141, %s143
    %p150 = scmp.eq.s32.totalorder %s23, 1
    %p151 = por %p149, %p150
    %p152 = scmp.ne.s32.totalorder %s143, %s144
    %p153 = scmp.eq.s32.totalorder %s23, 0
    %p154 = por %p152, %p153
    %p155 = scmp.ne.s32.totalorder %s143, %s144
    %p156 = scmp.eq.s32.totalorder %s24, 1
    %p157 = por %p155, %p156
    %p159 = scmp.ne.s32.totalorder %s144, %s158
    %p160 = scmp.eq.s32.totalorder %s24, 0
    %p161 = por %p159, %p160
    %s163 = sadd.s32 %s162, 1
    %p166 = scmp.eq.s32.totalorder %s18, 1
    %p167 = scmp.ne.s32.totalorder %s162, %s164
    %p168 = scmp.eq.s32.totalorder %s18, 0
    %p169 = por %p167, %p168
    %p170 = scmp.ne.s32.totalorder %s162, %s164
    %p171 = scmp.eq.s32.totalorder %s23, 1
    %p172 = por %p170, %p171
    %p173 = scmp.ne.s32.totalorder %s164, %s165
    %p174 = scmp.eq.s32.totalorder %s23, 0
    %p175 = por %p173, %p174
    %p176 = scmp.ne.s32.totalorder %s164, %s165
    %p177 = scmp.eq.s32.totalorder %s24, 1
    %p178 = por %p176, %p177
    %p180 = scmp.ne.s32.totalorder %s165, %s179
    %p181 = scmp.eq.s32.totalorder %s24, 0
    %p182 = por %p180, %p181
    %s184 = sadd.s32 %s183, 1
    %p187 = scmp.eq.s32.totalorder %s18, 1
    %p188 = scmp.ne.s32.totalorder %s183, %s185
    %p189 = scmp.eq.s32.totalorder %s18, 0
    %p190 = por %p188, %p189
    %p191 = scmp.ne.s32.totalorder %s183, %s185
    %p192 = scmp.eq.s32.totalorder %s23, 1
    %p193 = por %p191, %p192
    %p194 = scmp.ne.s32.totalorder %s185, %s186
    %p195 = scmp.eq.s32.totalorder %s23, 0
    %p196 = por %p194, %p195
    %p197 = scmp.ne.s32.totalorder %s185, %s186
    %p198 = scmp.eq.s32.totalorder %s24, 1
    %p199 = por %p197, %p198
    %p201 = scmp.ne.s32.totalorder %s186, %s200
    %p202 = scmp.eq.s32.totalorder %s24, 0
    %p203 = por %p201, %p202
    %s205 = sadd.s32 %s204, 1
    %p208 = scmp.eq.s32.totalorder %s18, 1
    %p209 = scmp.ne.s32.totalorder %s204, %s206
    %p210 = scmp.eq.s32.totalorder %s18, 0
    %p211 = por %p209, %p210
    %p212 = scmp.ne.s32.totalorder %s204, %s206
    %p213 = scmp.eq.s32.totalorder %s23, 1
    %p214 = por %p212, %p213
    %p215 = scmp.ne.s32.totalorder %s206, %s207
    %p216 = scmp.eq.s32.totalorder %s23, 0
    %p217 = por %p215, %p216
    %p218 = scmp.ne.s32.totalorder %s206, %s207
    %p219 = scmp.eq.s32.totalorder %s24, 1
    %p220 = por %p218, %p219
    %p222 = scmp.ne.s32.totalorder %s207, %s221
    %p223 = scmp.eq.s32.totalorder %s24, 0
    %p224 = por %p222, %p223
    %s226 = sadd.s32 %s225, 1
    %p229 = scmp.eq.s32.totalorder %s18, 1
    %p230 = scmp.ne.s32.totalorder %s225, %s227
    %p231 = scmp.eq.s32.totalorder %s18, 0
    %p232 = por %p230, %p231
    %p233 = scmp.ne.s32.totalorder %s225, %s227
    %p234 = scmp.eq.s32.totalorder %s23, 1
    %p235 = por %p233, %p234
    %p236 = scmp.ne.s32.totalorder %s227, %s228
    %p237 = scmp.eq.s32.totalorder %s23, 0
    %p238 = por %p236, %p237
    %p239 = scmp.ne.s32.totalorder %s227, %s228
    %p240 = scmp.eq.s32.totalorder %s24, 1
    %p241 = por %p239, %p240
    %p243 = scmp.ne.s32.totalorder %s228, %s242
    %p244 = scmp.eq.s32.totalorder %s24, 0
    %p245 = por %p243, %p244
    %s246 = ssub.s32 %s18, %s25
    %p247 = scmp.eq.s32.totalorder %s246, 0
    %s249 = sadd.s32 %s248, 1
    %s250 = scalar_select %p247, %s248, %s249
    %p253 = pneg %p247
    %p254 = scmp.eq.s32.totalorder %s18, 1
    %p255 = por %p253, %p254
    %p256 = scmp.ne.s32.totalorder %s248, %s251
    %p257 = scmp.eq.s32.totalorder %s18, 0
    %p258 = por %p256, %p257
    %p259 = scmp.ne.s32.totalorder %s248, %s251
    %p260 = scmp.eq.s32.totalorder %s23, 1
    %p261 = por %p259, %p260
    %p262 = scmp.ne.s32.totalorder %s251, %s252
    %p263 = scmp.eq.s32.totalorder %s23, 0
    %p264 = por %p262, %p263
    %p265 = scmp.ne.s32.totalorder %s251, %s252
    %p266 = scmp.eq.s32.totalorder %s24, 1
    %p267 = por %p265, %p266
    %p269 = scmp.ne.s32.totalorder %s252, %s268
    %p270 = scmp.eq.s32.totalorder %s24, 0
    %p271 = por %p269, %p270
    %p272 = scmp.le.s32.totalorder 1, %s18
    %p273 = scmp.lt.s32.totalorder %s18, 3
    %p274 = pnand %p272, %p273
    %p275 = pneg %p274
    // Predicated region
    $region9: #{_lambda_.2} parent=5 // pred_check
      _
    $region10: #{_lambda_.2} parent=5 // pred_check_branch
      %277 = sbr.rel (%p274) target = $region12
    $region11: #{_lambda_.2} parent=5 // pred_region
      %s278 = ssub.s32 %s18, 1
      // Predicated region
      $region13: #{_lambda_.2} parent=11 // pred_check
        %p279 = pneg %p91
      $region14: #{_lambda_.2} parent=11 // pred_check_branch
        %281 = sbr.rel (%p279) target = $region16
      $region15: #{_lambda_.2} parent=11 // pred_region
        _
      $region16: #{_lambda_.2} parent=11 // pred_fallthru
        _
      // Predicated region
      $region17: #{_lambda_.2} parent=11 // pred_check
        %p282 = pneg %p112
      $region18: #{_lambda_.2} parent=11 // pred_check_branch
        %284 = sbr.rel (%p282) target = $region20
      $region19: #{_lambda_.2} parent=11 // pred_region
        _
      $region20: #{_lambda_.2} parent=11 // pred_fallthru
        _
      // Predicated region
      $region21: #{_lambda_.2} parent=11 // pred_check
        %p285 = pneg %p133
      $region22: #{_lambda_.2} parent=11 // pred_check_branch
        %287 = sbr.rel (%p285) target = $region24
      $region23: #{_lambda_.2} parent=11 // pred_region
        _
      $region24: #{_lambda_.2} parent=11 // pred_fallthru
        _
      // Predicated region
      $region25: #{_lambda_.2} parent=11 // pred_check
        %p288 = pneg %p154
      $region26: #{_lambda_.2} parent=11 // pred_check_branch
        %290 = sbr.rel (%p288) target = $region28
      $region27: #{_lambda_.2} parent=11 // pred_region
        _
      $region28: #{_lambda_.2} parent=11 // pred_fallthru
        _
      // Predicated region
      $region29: #{_lambda_.2} parent=11 // pred_check
        %p291 = pneg %p175
      $region30: #{_lambda_.2} parent=11 // pred_check_branch
        %293 = sbr.rel (%p291) target = $region32
      $region31: #{_lambda_.2} parent=11 // pred_region
        _
      $region32: #{_lambda_.2} parent=11 // pred_fallthru
        _
      // Predicated region
      $region33: #{_lambda_.2} parent=11 // pred_check
        %p294 = pneg %p196
      $region34: #{_lambda_.2} parent=11 // pred_check_branch
        %296 = sbr.rel (%p294) target = $region36
      $region35: #{_lambda_.2} parent=11 // pred_region
        _
      $region36: #{_lambda_.2} parent=11 // pred_fallthru
        _
      // Predicated region
      $region37: #{_lambda_.2} parent=11 // pred_check
        %p297 = pneg %p217
      $region38: #{_lambda_.2} parent=11 // pred_check_branch
        %299 = sbr.rel (%p297) target = $region40
      $region39: #{_lambda_.2} parent=11 // pred_region
        _
      $region40: #{_lambda_.2} parent=11 // pred_fallthru
        _
      // Predicated region
      $region41: #{_lambda_.2} parent=11 // pred_check
        %p300 = pneg %p238
      $region42: #{_lambda_.2} parent=11 // pred_check_branch
        %302 = sbr.rel (%p300) target = $region44
      $region43: #{_lambda_.2} parent=11 // pred_region
        _
      $region44: #{_lambda_.2} parent=11 // pred_fallthru
        _
    $region12: #{_lambda_.2} parent=5 // pred_fallthru
      _
    %p303 = scmp.lt.s32.totalorder %s18, 2
    // Predicated region
    $region45: #{_lambda_.2} parent=5 // pred_check
      %p304 = pneg %p303
    $region46: #{_lambda_.2} parent=5 // pred_check_branch
      %306 = sbr.rel (%p304) target = $region48
    $region47: #{_lambda_.2} parent=5 // pred_region
      // Predicated region
      $region49: #{_lambda_.2} parent=47 // pred_check
        %p307 = pneg %p38
      $region50: #{_lambda_.2} parent=47 // pred_check_branch
        %309 = sbr.rel (%p307) target = $region52
      $region51: #{_lambda_.2} parent=47 // pred_region
        %p310 = scmp.lt.s32.totalorder %s18, 1
        %s311 = scalar_select %p310, %s18, 1
        %s312 = smul.addr %s311, 2
        %s313 = smul.addr %s312, 4
        %s314 = scalar_lea.vmem %s0, %s313
      $region52: #{_lambda_.2} parent=47 // pred_fallthru
        _
      // Predicated region
      $region53: #{_lambda_.2} parent=47 // pred_check
        %p315 = pneg %p64
      $region54: #{_lambda_.2} parent=47 // pred_check_branch
        %317 = sbr.rel (%p315) target = $region56
      $region55: #{_lambda_.2} parent=47 // pred_region
        %p318 = scmp.lt.s32.totalorder %s18, 1
        %s319 = scalar_select %p318, %s18, 1
        %s320 = smul.addr %s319, 2
        %s321 = smul.addr %s320, 8
        %s322 = scalar_lea.vmem %s1, %s321
      $region56: #{_lambda_.2} parent=47 // pred_fallthru
        _
    $region48: #{_lambda_.2} parent=5 // pred_fallthru
      _
    %p323 = scmp.le.s32.totalorder 1, %s18
    %p324 = scmp.lt.s32.totalorder %s18, 3
    %p325 = pnand %p323, %p324
    %p326 = pneg %p325
    // Predicated region
    $region57: #{_lambda_.2} parent=5 // pred_check
      _
    $region58: #{_lambda_.2} parent=5 // pred_check_branch
      %328 = sbr.rel (%p325) target = $region60
    $region59: #{_lambda_.2} parent=5 // pred_region
      %s329 = ssub.s32 %s18, 1
      %p330 = scmp.lt.s32.totalorder %s23, 1
      %s331 = scalar_select %p330, %s23, 1
      %s332 = smul.addr %s331, 2
      %s333 = smul.addr %s332, 4
      %s334 = scalar_lea.vmem %s0, %s333
      %p335 = pneg %p44
      %p336 = pneg %p41
      %p337 = scmp.lt.s32.totalorder %s23, 1
      %s338 = scalar_select %p337, %s23, 1
      %s339 = smul.addr %s338, 2
      %s340 = smul.addr %s339, 8
      %s341 = scalar_lea.vmem %s1, %s340
      %p342 = pneg %p70
      %p343 = pneg %p67
      %p344 = pneg %p91
      %p345 = pneg %p88
      %p346 = pneg %p112
      %p347 = pneg %p109
      %p348 = pneg %p133
      %p349 = pneg %p130
      %p350 = pneg %p154
      %p351 = pneg %p151
      %p352 = pneg %p175
      %p353 = pneg %p172
      %p354 = pneg %p196
      %p355 = pneg %p193
      %p356 = pneg %p217
      %p357 = pneg %p214
      %p358 = pneg %p238
      %p359 = pneg %p235
      %p360 = pneg %p264
      %p361 = pneg %p261
      %p362 = scmp.lt.s32.totalorder %s23, 1
      %s363 = scalar_select %p362, %s23, 1
      %s364 = smul.addr %s363, 2
      %s365 = smul.addr %s364, 8
      %s366 = scalar_lea.vmem %s10, %s365
      %p367 = scmp.lt.s32.totalorder %s23, 1
      %s368 = scalar_select %p367, %s23, 1
      %s369 = smul.addr %s368, 2
      %s370 = smul.addr %s369, 4
      %s371 = scalar_lea.vmem %s0, %s370
      %p372 = scmp.lt.s32.totalorder %s23, 1
      %s373 = scalar_select %p372, %s23, 1
      %s374 = smul.addr %s373, 2
      %s375 = smul.addr %s374, 8
      %s376 = scalar_lea.vmem %s1, %s375
      %p377 = scmp.lt.s32.totalorder %s23, 1
      %s378 = scalar_select %p377, %s23, 1
      %s379 = smul.addr %s378, 2
      %s380 = smul.addr %s379, 8
      %s381 = scalar_lea.vmem %s10, %s380
      %v383 = vld [vmem:[%s371] sm:$0xf]
      %v384 = vld [vmem:[%s371 + $0x4] sm:$0xf]
      %v385 = vld [vmem:[%s376] sm:$0xff]
      %v386 = vld [vmem:[%s376 + $0x8] sm:$0xff]
      %v387 = vunpack.c.l.bf16 %v383
      %v388 = vunpack.c.l.bf16 %v384
      %vm389 = vcmask 130048
      %v390 = vsel %vm389, %v387, 0.0
      %391 = vadd.xlane.f32.xlu0 %v390
      %v392 = vpop.xlane.xlu0 %391
      %v393 = vsel %vm389, %v388, 0.0
      %394 = vadd.xlane.f32.xlu0 %v393
      %v395 = vpop.xlane.xlu0 %394
      %v396 = vadd.f32 %v392, 1.0
      %v397 = vadd.f32 %v395, 1.0
      %v398 = vrcp.pop %v396
      %v399 = vmul.f32 1.0, %v398
      %v400 = vrcp.pop %v397
      %v401 = vmul.f32 1.0, %v400
      %v402 = vpack.c.bf16 %v386, %v385
      %v405 = vunpack.c.l.b16 %v383
      %v406 = vunpack.c.l.b16 %v384
      %v407 = vpack.c.b16 %v406, %v405
      %v409 = vsel %vm389, %v407, 0
      %411 = vmatprep.subr.bf16.mxu0 0
      %412 = vmatpush1.bf16.msra.mxu0 %v402
      %413 = vmatprep.subr.bf16.mxu0 0
      %414 = vmatpush1.bf16.msra.mxu0 0
      %415 = vmatprep.subr.bf16.mxu0 0
      %416 = vmatpush1.bf16.msra.mxu0 0
      %417 = vmatprep.subr.bf16.mxu0 0
      %418 = vmatpush1.bf16.msra.mxu0 0
      %419 = vmatprep.subr.bf16.mxu0 0
      %420 = vmatpush1.bf16.msra.mxu0 0
      %421 = vmatprep.subr.bf16.mxu0 0
      %422 = vmatpush1.bf16.msra.mxu0 0
      %423 = vmatprep.subr.bf16.mxu0 0
      %424 = vmatpush1.bf16.msra.mxu0 0
      %425 = vmatprep.subr.bf16.mxu0 0
      %426 = vmatpush1.bf16.msra.mxu0 0
      %427 = vmatprep.subr.bf16.mxu0 0
      %428 = vmatpush1.bf16.msra.mxu0 0
      %429 = vmatprep.subr.bf16.mxu0 0
      %430 = vmatpush1.bf16.msra.mxu0 0
      %431 = vmatprep.subr.bf16.mxu0 0
      %432 = vmatpush1.bf16.msra.mxu0 0
      %433 = vmatprep.subr.bf16.mxu0 0
      %434 = vmatpush1.bf16.msra.mxu0 0
      %435 = vmatprep.subr.bf16.mxu0 0
      %436 = vmatpush1.bf16.msra.mxu0 0
      %437 = vmatprep.subr.bf16.mxu0 0
      %438 = vmatpush1.bf16.msra.mxu0 0
      %439 = vmatprep.subr.bf16.mxu0 0
      %440 = vmatpush1.bf16.msra.mxu0 0
      %441 = vmatprep.subr.bf16.mxu0 0
      %442 = vmatpush1.bf16.msra.mxu0 0
      %443 = vmatprep.mubr.bf16.mxu0 0
      %444 = vmatmul.mubr.bf16.gmra.mrb[0].mxu0 %v409
      %v445 = vpop.f32.mrb[0].mxu0
      %v446 = vadd.f32 %v385, %v445
      %v447 = vpop.f32.mrb[0].mxu0
      %v448 = vpop.f32.mrb[0].mxu0
      %v449 = vadd.f32 %v386, %v448
      %v450 = vpop.f32.mrb[0].mxu0
      %451 = vdwg.mxu0
      %v452 = vpack.c.bf16 %v449, %v446
      %v453 = vld [vmem:[%s2] sm:$0xff]
      %v454 = vpack.c.bf16 %v453, %v453
      %v455 = vld [vmem:[%s3] sm:$0x1]
      %v457 = vlaneseq
      %v458 = vshrl.u32 %v457, 7
      %v459 = vsub.s32 0, %v458
      %v460 = vrot.slane %v455, %v459
      %vm462 = vcmask 64512
      %v464 = vsel %vm462, %v452, 0
      %vm466 = vcmask 1043456
      %v468 = vsel %vm466, %v454, 0
      %470 = vmatprep.subr.bf16.mxu0 0
      %471 = vmatpush1.bf16.msra.mxu0 %v468
      %472 = vmatprep.subr.bf16.mxu0 0
      %473 = vmatpush1.bf16.msra.mxu0 0
      %474 = vmatprep.subr.bf16.mxu0 0
      %475 = vmatpush1.bf16.msra.mxu0 0
      %476 = vmatprep.subr.bf16.mxu0 0
      %477 = vmatpush1.bf16.msra.mxu0 0
      %478 = vmatprep.subr.bf16.mxu0 0
      %479 = vmatpush1.bf16.msra.mxu0 0
      %480 = vmatprep.subr.bf16.mxu0 0
      %481 = vmatpush1.bf16.msra.mxu0 0
      %482 = vmatprep.subr.bf16.mxu0 0
      %483 = vmatpush1.bf16.msra.mxu0 0
      %484 = vmatprep.subr.bf16.mxu0 0
      %485 = vmatpush1.bf16.msra.mxu0 0
      %486 = vmatprep.subr.bf16.mxu0 0
      %487 = vmatpush1.bf16.msra.mxu0 0
      %488 = vmatprep.subr.bf16.mxu0 0
      %489 = vmatpush1.bf16.msra.mxu0 0
      %490 = vmatprep.subr.bf16.mxu0 0
      %491 = vmatpush1.bf16.msra.mxu0 0
      %492 = vmatprep.subr.bf16.mxu0 0
      %493 = vmatpush1.bf16.msra.mxu0 0
      %494 = vmatprep.subr.bf16.mxu0 0
      %495 = vmatpush1.bf16.msra.mxu0 0
      %496 = vmatprep.subr.bf16.mxu0 0
      %497 = vmatpush1.bf16.msra.mxu0 0
      %498 = vmatprep.subr.bf16.mxu0 0
      %499 = vmatpush1.bf16.msra.mxu0 0
      %500 = vmatprep.subr.bf16.mxu0 0
      %501 = vmatpush1.bf16.msra.mxu0 0
      %502 = vmatprep.mubr.bf16.mxu0 0
      %503 = vmatmul.mubr.bf16.gmra.mrb[0].mxu0 %v464
      %v504 = vpop.f32.mrb[0].mxu0
      %v505 = vadd.f32 %v460, %v504
      %v506 = vpop.f32.mrb[0].mxu0
      %v507 = vpop.f32.mrb[0].mxu0
      %v508 = vadd.f32 %v460, %v507
      %v509 = vpop.f32.mrb[0].mxu0
      %510 = vdwg.mxu0
      %v511 = vmul.f32 %v505, %v399
      %v512 = vmul.f32 %v508, %v401
      %v513 = vtanh.pop %v511
      %v514 = vtanh.pop %v512
      %v515 = vpack.c.bf16 %v514, %v513
      %516 = vmatprep.subr.bf16.mxu0 0
      %517 = vmatpush1.bf16.msra.mxu0 %v515
      %518 = vmatprep.subr.bf16.mxu0 0
      %519 = vmatpush1.bf16.msra.mxu0 0
      %520 = vmatprep.subr.bf16.mxu0 0
      %521 = vmatpush1.bf16.msra.mxu0 0
      %522 = vmatprep.subr.bf16.mxu0 0
      %523 = vmatpush1.bf16.msra.mxu0 0
      %524 = vmatprep.subr.bf16.mxu0 0
      %525 = vmatpush1.bf16.msra.mxu0 0
      %526 = vmatprep.subr.bf16.mxu0 0
      %527 = vmatpush1.bf16.msra.mxu0 0
      %528 = vmatprep.subr.bf16.mxu0 0
      %529 = vmatpush1.bf16.msra.mxu0 0
      %530 = vmatprep.subr.bf16.mxu0 0
      %531 = vmatpush1.bf16.msra.mxu0 0
      %532 = vmatprep.subr.bf16.mxu0 0
      %533 = vmatpush1.bf16.msra.mxu0 0
      %534 = vmatprep.subr.bf16.mxu0 0
      %535 = vmatpush1.bf16.msra.mxu0 0
      %536 = vmatprep.subr.bf16.mxu0 0
      %537 = vmatpush1.bf16.msra.mxu0 0
      %538 = vmatprep.subr.bf16.mxu0 0
      %539 = vmatpush1.bf16.msra.mxu0 0
      %540 = vmatprep.subr.bf16.mxu0 0
      %541 = vmatpush1.bf16.msra.mxu0 0
      %542 = vmatprep.subr.bf16.mxu0 0
      %543 = vmatpush1.bf16.msra.mxu0 0
      %544 = vmatprep.subr.bf16.mxu0 0
      %545 = vmatpush1.bf16.msra.mxu0 0
      %546 = vmatprep.subr.bf16.mxu0 0
      %547 = vmatpush1.bf16.msra.mxu0 0
      %548 = vmatprep.mubr.bf16.mxu0 0
      %549 = vmatmul.mubr.bf16.gmra.mrb[0].mxu0 %v409
      %v550 = vpop.f32.mrb[0].mxu0
      %v551 = vadd.f32 %v513, %v550
      %v552 = vpop.f32.mrb[0].mxu0
      %v553 = vpop.f32.mrb[0].mxu0
      %v554 = vadd.f32 %v514, %v553
      %v555 = vpop.f32.mrb[0].mxu0
      %556 = vdwg.mxu0
      %v557 = vpack.c.bf16 %v554, %v551
      %v558 = vld [vmem:[%s4] sm:$0xff]
      %v559 = vpack.c.bf16 %v558, %v558
      %v560 = vld [vmem:[%s5] sm:$0x1]
      %v562 = vlaneseq
      %v563 = vshrl.u32 %v562, 7
      %v564 = vsub.s32 0, %v563
      %v565 = vrot.slane %v560, %v564
      %v568 = vsel %vm462, %v557, 0
      %v571 = vsel %vm466, %v559, 0
      %573 = vmatprep.subr.bf16.mxu0 0
      %574 = vmatpush1.bf16.msra.mxu0 %v571
      %575 = vmatprep.subr.bf16.mxu0 0
      %576 = vmatpush1.bf16.msra.mxu0 0
      %577 = vmatprep.subr.bf16.mxu0 0
      %578 = vmatpush1.bf16.msra.mxu0 0
      %579 = vmatprep.subr.bf16.mxu0 0
      %580 = vmatpush1.bf16.msra.mxu0 0
      %581 = vmatprep.subr.bf16.mxu0 0
      %582 = vmatpush1.bf16.msra.mxu0 0
      %583 = vmatprep.subr.bf16.mxu0 0
      %584 = vmatpush1.bf16.msra.mxu0 0
      %585 = vmatprep.subr.bf16.mxu0 0
      %586 = vmatpush1.bf16.msra.mxu0 0
      %587 = vmatprep.subr.bf16.mxu0 0
      %588 = vmatpush1.bf16.msra.mxu0 0
      %589 = vmatprep.subr.bf16.mxu0 0
      %590 = vmatpush1.bf16.msra.mxu0 0
      %591 = vmatprep.subr.bf16.mxu0 0
      %592 = vmatpush1.bf16.msra.mxu0 0
      %593 = vmatprep.subr.bf16.mxu0 0
      %594 = vmatpush1.bf16.msra.mxu0 0
      %595 = vmatprep.subr.bf16.mxu0 0
      %596 = vmatpush1.bf16.msra.mxu0 0
      %597 = vmatprep.subr.bf16.mxu0 0
      %598 = vmatpush1.bf16.msra.mxu0 0
      %599 = vmatprep.subr.bf16.mxu0 0
      %600 = vmatpush1.bf16.msra.mxu0 0
      %601 = vmatprep.subr.bf16.mxu0 0
      %602 = vmatpush1.bf16.msra.mxu0 0
      %603 = vmatprep.subr.bf16.mxu0 0
      %604 = vmatpush1.bf16.msra.mxu0 0
      %605 = vmatprep.mubr.bf16.mxu0 0
      %606 = vmatmul.mubr.bf16.gmra.mrb[0].mxu0 %v568
      %v607 = vpop.f32.mrb[0].mxu0
      %v608 = vadd.f32 %v565, %v607
      %v609 = vpop.f32.mrb[0].mxu0
      %v610 = vpop.f32.mrb[0].mxu0
      %v611 = vadd.f32 %v565, %v610
      %v612 = vpop.f32.mrb[0].mxu0
      %613 = vdwg.mxu0
      %v614 = vmul.f32 %v608, %v399
      %v615 = vmul.f32 %v611, %v401
      %v616 = vtanh.pop %v614
      %v617 = vtanh.pop %v615
      %v618 = vpack.c.bf16 %v617, %v616
      %619 = vmatprep.subr.bf16.mxu0 0
      %620 = vmatpush1.bf16.msra.mxu0 %v618
      %621 = vmatprep.subr.bf16.mxu0 0
      %622 = vmatpush1.bf16.msra.mxu0 0
      %623 = vmatprep.subr.bf16.mxu0 0
      %624 = vmatpush1.bf16.msra.mxu0 0
      %625 = vmatprep.subr.bf16.mxu0 0
      %626 = vmatpush1.bf16.msra.mxu0 0
      %627 = vmatprep.subr.bf16.mxu0 0
      %628 = vmatpush1.bf16.msra.mxu0 0
      %629 = vmatprep.subr.bf16.mxu0 0
      %630 = vmatpush1.bf16.msra.mxu0 0
      %631 = vmatprep.subr.bf16.mxu0 0
      %632 = vmatpush1.bf16.msra.mxu0 0
      %633 = vmatprep.subr.bf16.mxu0 0
      %634 = vmatpush1.bf16.msra.mxu0 0
      %635 = vmatprep.subr.bf16.mxu0 0
      %636 = vmatpush1.bf16.msra.mxu0 0
      %637 = vmatprep.subr.bf16.mxu0 0
      %638 = vmatpush1.bf16.msra.mxu0 0
      %639 = vmatprep.subr.bf16.mxu0 0
      %640 = vmatpush1.bf16.msra.mxu0 0
      %641 = vmatprep.subr.bf16.mxu0 0
      %642 = vmatpush1.bf16.msra.mxu0 0
      %643 = vmatprep.subr.bf16.mxu0 0
      %644 = vmatpush1.bf16.msra.mxu0 0
      %645 = vmatprep.subr.bf16.mxu0 0
      %646 = vmatpush1.bf16.msra.mxu0 0
      %647 = vmatprep.subr.bf16.mxu0 0
      %648 = vmatpush1.bf16.msra.mxu0 0
      %649 = vmatprep.subr.bf16.mxu0 0
      %650 = vmatpush1.bf16.msra.mxu0 0
      %651 = vmatprep.mubr.bf16.mxu0 0
      %652 = vmatmul.mubr.bf16.gmra.mrb[0].mxu0 %v409
      %v653 = vpop.f32.mrb[0].mxu0
      %v654 = vadd.f32 %v616, %v653
      %v655 = vpop.f32.mrb[0].mxu0
      %v656 = vpop.f32.mrb[0].mxu0
      %v657 = vadd.f32 %v617, %v656
      %v658 = vpop.f32.mrb[0].mxu0
      %659 = vdwg.mxu0
      %v660 = vpack.c.bf16 %v657, %v654
      %v661 = vld [vmem:[%s6] sm:$0xff]
      %v662 = vpack.c.bf16 %v661, %v661
      %v663 = vld [vmem:[%s7] sm:$0x1]
      %v665 = vlaneseq
      %v666 = vshrl.u32 %v665, 7
      %v667 = vsub.s32 0, %v666
      %v668 = vrot.slane %v663, %v667
      %v671 = vsel %vm462, %v660, 0
      %v674 = vsel %vm466, %v662, 0
      %676 = vmatprep.subr.bf16.mxu0 0
      %677 = vmatpush1.bf16.msra.mxu0 %v674
      %678 = vmatprep.subr.bf16.mxu0 0
      %679 = vmatpush1.bf16.msra.mxu0 0
      %680 = vmatprep.subr.bf16.mxu0 0
      %681 = vmatpush1.bf16.msra.mxu0 0
      %682 = vmatprep.subr.bf16.mxu0 0
      %683 = vmatpush1.bf16.msra.mxu0 0
      %684 = vmatprep.subr.bf16.mxu0 0
      %685 = vmatpush1.bf16.msra.mxu0 0
      %686 = vmatprep.subr.bf16.mxu0 0
      %687 = vmatpush1.bf16.msra.mxu0 0
      %688 = vmatprep.subr.bf16.mxu0 0
      %689 = vmatpush1.bf16.msra.mxu0 0
      %690 = vmatprep.subr.bf16.mxu0 0
      %691 = vmatpush1.bf16.msra.mxu0 0
      %692 = vmatprep.subr.bf16.mxu0 0
      %693 = vmatpush1.bf16.msra.mxu0 0
      %694 = vmatprep.subr.bf16.mxu0 0
      %695 = vmatpush1.bf16.msra.mxu0 0
      %696 = vmatprep.subr.bf16.mxu0 0
      %697 = vmatpush1.bf16.msra.mxu0 0
      %698 = vmatprep.subr.bf16.mxu0 0
      %699 = vmatpush1.bf16.msra.mxu0 0
      %700 = vmatprep.subr.bf16.mxu0 0
      %701 = vmatpush1.bf16.msra.mxu0 0
      %702 = vmatprep.subr.bf16.mxu0 0
      %703 = vmatpush1.bf16.msra.mxu0 0
      %704 = vmatprep.subr.bf16.mxu0 0
      %705 = vmatpush1.bf16.msra.mxu0 0
      %706 = vmatprep.subr.bf16.mxu0 0
      %707 = vmatpush1.bf16.msra.mxu0 0
      %708 = vmatprep.mubr.bf16.mxu0 0
      %709 = vmatmul.mubr.bf16.gmra.mrb[0].mxu0 %v671
      %v710 = vpop.f32.mrb[0].mxu0
      %v711 = vadd.f32 %v668, %v710
      %v712 = vpop.f32.mrb[0].mxu0
      %v713 = vpop.f32.mrb[0].mxu0
      %v714 = vadd.f32 %v668, %v713
      %v715 = vpop.f32.mrb[0].mxu0
      %716 = vdwg.mxu0
      %v717 = vmul.f32 %v711, %v399
      %v718 = vmul.f32 %v714, %v401
      %v719 = vtanh.pop %v717
      %v720 = vtanh.pop %v718
      %v721 = vpack.c.bf16 %v720, %v719
      %722 = vmatprep.subr.bf16.mxu0 0
      %723 = vmatpush1.bf16.msra.mxu0 %v721
      %724 = vmatprep.subr.bf16.mxu0 0
      %725 = vmatpush1.bf16.msra.mxu0 0
      %726 = vmatprep.subr.bf16.mxu0 0
      %727 = vmatpush1.bf16.msra.mxu0 0
      %728 = vmatprep.subr.bf16.mxu0 0
      %729 = vmatpush1.bf16.msra.mxu0 0
      %730 = vmatprep.subr.bf16.mxu0 0
      %731 = vmatpush1.bf16.msra.mxu0 0
      %732 = vmatprep.subr.bf16.mxu0 0
      %733 = vmatpush1.bf16.msra.mxu0 0
      %734 = vmatprep.subr.bf16.mxu0 0
      %735 = vmatpush1.bf16.msra.mxu0 0
      %736 = vmatprep.subr.bf16.mxu0 0
      %737 = vmatpush1.bf16.msra.mxu0 0
      %738 = vmatprep.subr.bf16.mxu0 0
      %739 = vmatpush1.bf16.msra.mxu0 0
      %740 = vmatprep.subr.bf16.mxu0 0
      %741 = vmatpush1.bf16.msra.mxu0 0
      %742 = vmatprep.subr.bf16.mxu0 0
      %743 = vmatpush1.bf16.msra.mxu0 0
      %744 = vmatprep.subr.bf16.mxu0 0
      %745 = vmatpush1.bf16.msra.mxu0 0
      %746 = vmatprep.subr.bf16.mxu0 0
      %747 = vmatpush1.bf16.msra.mxu0 0
      %748 = vmatprep.subr.bf16.mxu0 0
      %749 = vmatpush1.bf16.msra.mxu0 0
      %750 = vmatprep.subr.bf16.mxu0 0
      %751 = vmatpush1.bf16.msra.mxu0 0
      %752 = vmatprep.subr.bf16.mxu0 0
      %753 = vmatpush1.bf16.msra.mxu0 0
      %754 = vmatprep.mubr.bf16.mxu0 0
      %755 = vmatmul.mubr.bf16.gmra.mrb[0].mxu0 %v409
      %v756 = vpop.f32.mrb[0].mxu0
      %v757 = vadd.f32 %v719, %v756
      %v758 = vpop.f32.mrb[0].mxu0
      %v759 = vpop.f32.mrb[0].mxu0
      %v760 = vadd.f32 %v720, %v759
      %v761 = vpop.f32.mrb[0].mxu0
      %762 = vdwg.mxu0
      %v763 = vpack.c.bf16 %v760, %v757
      %v764 = vld [vmem:[%s8] sm:$0xff]
      %v765 = vpack.c.bf16 %v764, %v764
      %v766 = vld [vmem:[#allocation2] sm:$0x1]
      %v768 = vlaneseq
      %v769 = vshrl.u32 %v768, 7
      %v770 = vsub.s32 0, %v769
      %v771 = vrot.slane %v766, %v770
      %v774 = vsel %vm462, %v763, 0
      %v777 = vsel %vm466, %v765, 0
      %779 = vmatprep.subr.bf16.mxu0 0
      %780 = vmatpush1.bf16.msra.mxu0 %v777
      %781 = vmatprep.subr.bf16.mxu0 0
      %782 = vmatpush1.bf16.msra.mxu0 0
      %783 = vmatprep.subr.bf16.mxu0 0
      %784 = vmatpush1.bf16.msra.mxu0 0
      %785 = vmatprep.subr.bf16.mxu0 0
      %786 = vmatpush1.bf16.msra.mxu0 0
      %787 = vmatprep.subr.bf16.mxu0 0
      %788 = vmatpush1.bf16.msra.mxu0 0
      %789 = vmatprep.subr.bf16.mxu0 0
      %790 = vmatpush1.bf16.msra.mxu0 0
      %791 = vmatprep.subr.bf16.mxu0 0
      %792 = vmatpush1.bf16.msra.mxu0 0
      %793 = vmatprep.subr.bf16.mxu0 0
      %794 = vmatpush1.bf16.msra.mxu0 0
      %795 = vmatprep.subr.bf16.mxu0 0
      %796 = vmatpush1.bf16.msra.mxu0 0
      %797 = vmatprep.subr.bf16.mxu0 0
      %798 = vmatpush1.bf16.msra.mxu0 0
      %799 = vmatprep.subr.bf16.mxu0 0
      %800 = vmatpush1.bf16.msra.mxu0 0
      %801 = vmatprep.subr.bf16.mxu0 0
      %802 = vmatpush1.bf16.msra.mxu0 0
      %803 = vmatprep.subr.bf16.mxu0 0
      %804 = vmatpush1.bf16.msra.mxu0 0
      %805 = vmatprep.subr.bf16.mxu0 0
      %806 = vmatpush1.bf16.msra.mxu0 0
      %807 = vmatprep.subr.bf16.mxu0 0
      %808 = vmatpush1.bf16.msra.mxu0 0
      %809 = vmatprep.subr.bf16.mxu0 0
      %810 = vmatpush1.bf16.msra.mxu0 0
      %811 = vmatprep.mubr.bf16.mxu0 0
      %812 = vmatmul.mubr.bf16.gmra.mrb[0].mxu0 %v774
      %v813 = vpop.f32.mrb[0].mxu0
      %v814 = vadd.f32 %v771, %v813
      %v815 = vpop.f32.mrb[0].mxu0
      %v816 = vpop.f32.mrb[0].mxu0
      %v817 = vadd.f32 %v771, %v816
      %v818 = vpop.f32.mrb[0].mxu0
      %819 = vdwg.mxu0
      %v820 = vmul.f32 %v814, %v399
      %v821 = vmul.f32 %v817, %v401
      %v822 = vtanh.pop %v820
      %v823 = vtanh.pop %v821
      %826 = vrot.lane.b32.xlu0 %v616, 8
      %v827 = vpop.permute.xlu0 %826
      %828 = vrot.lane.b32.xlu0 %v617, 8
      %v829 = vpop.permute.xlu0 %828
      %834 = vrot.lane.b32.xlu0 %v719, 16
      %v835 = vpop.permute.xlu0 %834
      %836 = vrot.lane.b32.xlu0 %v720, 16
      %v837 = vpop.permute.xlu0 %836
      %842 = vrot.lane.b32.xlu0 %v822, 24
      %v843 = vpop.permute.xlu0 %842
      %844 = vrot.lane.b32.xlu0 %v823, 24
      %v845 = vpop.permute.xlu0 %844
      %v848 = vsel %vm462, %v513, %v827
      %v849 = vsel %vm462, %v514, %v829
      %v850 = vsel %vm389, %v848, %v835
      %v851 = vsel %vm389, %v849, %v837
      %vm852 = vcmask 195584
      %v853 = vsel %vm852, %v850, %v843
      %v854 = vsel %vm852, %v851, %v845
      %vm855 = vcmask 203776
      %v856 = vsel %vm855, %v853, 0.0
      %v857 = vsel %vm855, %v854, 0.0
      %858 = vst [vmem:[%s381] sm:$0xff] %v856
      %859 = vst [vmem:[%s381 + $0x8] sm:$0xff] %v857
      %p860 = scmp.lt.s32.totalorder %s23, 1
      %s861 = scalar_select %p860, %s23, 1
      %s862 = smul.addr %s861, 2
      %s863 = smul.addr %s862, 8
      %s864 = scalar_lea.vmem %s10, %s863
      // Predicated region
      $region61: #{_lambda_.2} parent=59 // pred_check
        %p865 = pneg %p261
      $region62: #{_lambda_.2} parent=59 // pred_check_branch
        %867 = sbr.rel (%p865) target = $region64
      $region63: #{_lambda_.2} parent=59 // pred_region
        _
      $region64: #{_lambda_.2} parent=59 // pred_fallthru
        _
    $region60: #{_lambda_.2} parent=5 // pred_fallthru
      _
    %p868 = scmp.le.s32.totalorder 2, %s18
    // Predicated region
    $region65: #{_lambda_.2} parent=5 // pred_check
      %p869 = pneg %p868
    $region66: #{_lambda_.2} parent=5 // pred_check_branch
      %871 = sbr.rel (%p869) target = $region68
    $region67: #{_lambda_.2} parent=5 // pred_region
      %s872 = ssub.s32 %s18, 2
      // Predicated region
      $region69: #{_lambda_.2} parent=67 // pred_check
        %p873 = pneg %p267
      $region70: #{_lambda_.2} parent=67 // pred_check_branch
        %875 = sbr.rel (%p873) target = $region72
      $region71: #{_lambda_.2} parent=67 // pred_region
        %p876 = scmp.lt.s32.totalorder %s24, 1
        %s877 = scalar_select %p876, %s24, 1
        %s878 = smul.addr %s877, 2
        %s879 = smul.addr %s878, 8
        %s880 = scalar_lea.vmem %s10, %s879
      $region72: #{_lambda_.2} parent=67 // pred_fallthru
        _
    $region68: #{_lambda_.2} parent=5 // pred_fallthru
      _
  $region6: #{_lambda_.2} parent=0 // loop_footer
    %s22 = sadd.s32 1, %s18
  $region7: #{_lambda_.2} parent=0 // loop_footer_branch
    %17 = sbr.rel target = $region3
  $region8: #{_lambda_.2} parent=0 // loop_exit
    _

// kernel: _lambda_.3
$region0: #{_lambda_.3}
  #allocation0 [shape = 'u32[]', space=smem, size = 0x4, offset = 0x4, fixed_abs, tag = 'smem constant byte address 0x4 - core index']
  #allocation1 [shape = 'u32[144,128]{1,0:T(1,128)}', space=vmem, size = 0x12000, scoped, tag = 'internal scratch']
  %s0 = inlined_call_operand.vmem [shape: f32[2,6,50], index: 0, kind: input, shape index: {}]
  %s1 = inlined_call_operand.vmem [shape: f32[50,32], index: 1, kind: input, shape index: {}]
  %s2 = inlined_call_operand.vmem [shape: f32[1,32], index: 2, kind: input, shape index: {}]
  %s3 = inlined_call_operand.vmem [shape: f32[80,32], index: 3, kind: input, shape index: {}]
  %s4 = inlined_call_operand.vmem [shape: f32[1,32], index: 4, kind: input, shape index: {}]
  %s5 = inlined_call_operand.vmem [shape: f32[64,32], index: 5, kind: input, shape index: {}]
  %s6 = inlined_call_operand.vmem [shape: f32[1,32], index: 6, kind: input, shape index: {}]
  %s7 = inlined_call_operand.vmem [shape: f32[32,16], index: 7, kind: input, shape index: {}]
  %s8 = inlined_call_operand.vmem [shape: f32[1,16], index: 8, kind: input, shape index: {}]
  %s9 = inlined_call_operand.vmem [shape: f32[16,3], index: 9, kind: input, shape index: {}]
  %s10 = inlined_call_operand.vmem [shape: f32[1,3], index: 10, kind: input, shape index: {}]
  %s11 = inlined_call_operand.vmem [shape: f32[2,1,3], index: 11, kind: output, shape index: {}]
  %s12 = sld [smem:[#allocation0]]
  $region77: #{_lambda_.3} parent=0
    _
  %s14 = ssub.s32 1, %s12
  %s15 = scalar_select 0, %s14, %s12
  loop: start=0, step=1, limit=4
  $region2: #{_lambda_.3} parent=0 // loop_pre_header
    _
  $region3: #{_lambda_.3} parent=0 // loop_header
    %s17 = sphi 0, %s21
    %p18 = scmp.ge.s32.totalorder %s17, 4
    %s27 = sphi 0, %s29
    %s30 = sphi 0, %s27
    %s31 = sphi 0, %s30
    %s47 = sphi 0, %s31
    %s51 = sphi 0, %s51
    %s53 = sphi 0, %s51
    %s54 = sphi 0, %s53
    %s68 = sphi 0, %s54
    %s72 = sphi 0, %s72
    %s74 = sphi 0, %s72
    %s75 = sphi 0, %s74
    %s89 = sphi 0, %s75
    %s93 = sphi 0, %s93
    %s95 = sphi 0, %s93
    %s96 = sphi 0, %s95
    %s110 = sphi 0, %s96
    %s114 = sphi 0, %s114
    %s116 = sphi 0, %s114
    %s117 = sphi 0, %s116
    %s131 = sphi 0, %s117
    %s135 = sphi 0, %s135
    %s137 = sphi 0, %s135
    %s138 = sphi 0, %s137
    %s152 = sphi 0, %s138
    %s156 = sphi 0, %s156
    %s158 = sphi 0, %s156
    %s159 = sphi 0, %s158
    %s173 = sphi 0, %s159
    %s177 = sphi 0, %s177
    %s179 = sphi 0, %s177
    %s180 = sphi 0, %s179
    %s194 = sphi 0, %s180
    %s198 = sphi 0, %s198
    %s200 = sphi 0, %s198
    %s201 = sphi 0, %s200
    %s215 = sphi 0, %s201
    %s219 = sphi 0, %s219
    %s221 = sphi 0, %s219
    %s222 = sphi 0, %s221
    %s236 = sphi 0, %s222
    %s240 = sphi 0, %s240
    %s242 = sphi 0, %s240
    %s243 = sphi 0, %s242
    %s257 = sphi 0, %s243
    %s263 = sphi 0, %s265
    %s266 = sphi 0, %s263
    %s267 = sphi 0, %s266
    %s283 = sphi 0, %s267
  $region4: #{_lambda_.3} parent=0 // loop_header_branch
    %20 = sbr.rel (%p18) target = $region8
  $region5: #{_lambda_.3} parent=0 // loop_body
    %s22 = ssub.s32 %s17, 1
    %s23 = ssub.s32 %s17, 2
    %s24 = sadd.s32 %s17, 1
    %s25 = ssub.s32 %s17, %s24
    %p26 = scmp.eq.s32.totalorder %s25, 0
    %s28 = sadd.s32 %s27, 1
    %s29 = scalar_select %p26, %s27, %s28
    %p32 = pneg %p26
    %p33 = scmp.eq.s32.totalorder %s17, 1
    %p34 = por %p32, %p33
    %p35 = scmp.ne.s32.totalorder %s27, %s30
    %p36 = scmp.eq.s32.totalorder %s17, 0
    %p37 = por %p35, %p36
    %p38 = scmp.ne.s32.totalorder %s27, %s30
    %p39 = scmp.eq.s32.totalorder %s22, 1
    %p40 = por %p38, %p39
    %p41 = scmp.ne.s32.totalorder %s30, %s31
    %p42 = scmp.eq.s32.totalorder %s22, 0
    %p43 = por %p41, %p42
    %p44 = scmp.ne.s32.totalorder %s30, %s31
    %p45 = scmp.eq.s32.totalorder %s23, 1
    %p46 = por %p44, %p45
    %p48 = scmp.ne.s32.totalorder %s31, %s47
    %p49 = scmp.eq.s32.totalorder %s23, 0
    %p50 = por %p48, %p49
    %s52 = sadd.s32 %s51, 1
    %p55 = scmp.eq.s32.totalorder %s17, 1
    %p56 = scmp.ne.s32.totalorder %s51, %s53
    %p57 = scmp.eq.s32.totalorder %s17, 0
    %p58 = por %p56, %p57
    %p59 = scmp.ne.s32.totalorder %s51, %s53
    %p60 = scmp.eq.s32.totalorder %s22, 1
    %p61 = por %p59, %p60
    %p62 = scmp.ne.s32.totalorder %s53, %s54
    %p63 = scmp.eq.s32.totalorder %s22, 0
    %p64 = por %p62, %p63
    %p65 = scmp.ne.s32.totalorder %s53, %s54
    %p66 = scmp.eq.s32.totalorder %s23, 1
    %p67 = por %p65, %p66
    %p69 = scmp.ne.s32.totalorder %s54, %s68
    %p70 = scmp.eq.s32.totalorder %s23, 0
    %p71 = por %p69, %p70
    %s73 = sadd.s32 %s72, 1
    %p76 = scmp.eq.s32.totalorder %s17, 1
    %p77 = scmp.ne.s32.totalorder %s72, %s74
    %p78 = scmp.eq.s32.totalorder %s17, 0
    %p79 = por %p77, %p78
    %p80 = scmp.ne.s32.totalorder %s72, %s74
    %p81 = scmp.eq.s32.totalorder %s22, 1
    %p82 = por %p80, %p81
    %p83 = scmp.ne.s32.totalorder %s74, %s75
    %p84 = scmp.eq.s32.totalorder %s22, 0
    %p85 = por %p83, %p84
    %p86 = scmp.ne.s32.totalorder %s74, %s75
    %p87 = scmp.eq.s32.totalorder %s23, 1
    %p88 = por %p86, %p87
    %p90 = scmp.ne.s32.totalorder %s75, %s89
    %p91 = scmp.eq.s32.totalorder %s23, 0
    %p92 = por %p90, %p91
    %s94 = sadd.s32 %s93, 1
    %p97 = scmp.eq.s32.totalorder %s17, 1
    %p98 = scmp.ne.s32.totalorder %s93, %s95
    %p99 = scmp.eq.s32.totalorder %s17, 0
    %p100 = por %p98, %p99
    %p101 = scmp.ne.s32.totalorder %s93, %s95
    %p102 = scmp.eq.s32.totalorder %s22, 1
    %p103 = por %p101, %p102
    %p104 = scmp.ne.s32.totalorder %s95, %s96
    %p105 = scmp.eq.s32.totalorder %s22, 0
    %p106 = por %p104, %p105
    %p107 = scmp.ne.s32.totalorder %s95, %s96
    %p108 = scmp.eq.s32.totalorder %s23, 1
    %p109 = por %p107, %p108
    %p111 = scmp.ne.s32.totalorder %s96, %s110
    %p112 = scmp.eq.s32.totalorder %s23, 0
    %p113 = por %p111, %p112
    %s115 = sadd.s32 %s114, 1
    %p118 = scmp.eq.s32.totalorder %s17, 1
    %p119 = scmp.ne.s32.totalorder %s114, %s116
    %p120 = scmp.eq.s32.totalorder %s17, 0
    %p121 = por %p119, %p120
    %p122 = scmp.ne.s32.totalorder %s114, %s116
    %p123 = scmp.eq.s32.totalorder %s22, 1
    %p124 = por %p122, %p123
    %p125 = scmp.ne.s32.totalorder %s116, %s117
    %p126 = scmp.eq.s32.totalorder %s22, 0
    %p127 = por %p125, %p126
    %p128 = scmp.ne.s32.totalorder %s116, %s117
    %p129 = scmp.eq.s32.totalorder %s23, 1
    %p130 = por %p128, %p129
    %p132 = scmp.ne.s32.totalorder %s117, %s131
    %p133 = scmp.eq.s32.totalorder %s23, 0
    %p134 = por %p132, %p133
    %s136 = sadd.s32 %s135, 1
    %p139 = scmp.eq.s32.totalorder %s17, 1
    %p140 = scmp.ne.s32.totalorder %s135, %s137
    %p141 = scmp.eq.s32.totalorder %s17, 0
    %p142 = por %p140, %p141
    %p143 = scmp.ne.s32.totalorder %s135, %s137
    %p144 = scmp.eq.s32.totalorder %s22, 1
    %p145 = por %p143, %p144
    %p146 = scmp.ne.s32.totalorder %s137, %s138
    %p147 = scmp.eq.s32.totalorder %s22, 0
    %p148 = por %p146, %p147
    %p149 = scmp.ne.s32.totalorder %s137, %s138
    %p150 = scmp.eq.s32.totalorder %s23, 1
    %p151 = por %p149, %p150
    %p153 = scmp.ne.s32.totalorder %s138, %s152
    %p154 = scmp.eq.s32.totalorder %s23, 0
    %p155 = por %p153, %p154
    %s157 = sadd.s32 %s156, 1
    %p160 = scmp.eq.s32.totalorder %s17, 1
    %p161 = scmp.ne.s32.totalorder %s156, %s158
    %p162 = scmp.eq.s32.totalorder %s17, 0
    %p163 = por %p161, %p162
    %p164 = scmp.ne.s32.totalorder %s156, %s158
    %p165 = scmp.eq.s32.totalorder %s22, 1
    %p166 = por %p164, %p165
    %p167 = scmp.ne.s32.totalorder %s158, %s159
    %p168 = scmp.eq.s32.totalorder %s22, 0
    %p169 = por %p167, %p168
    %p170 = scmp.ne.s32.totalorder %s158, %s159
    %p171 = scmp.eq.s32.totalorder %s23, 1
    %p172 = por %p170, %p171
    %p174 = scmp.ne.s32.totalorder %s159, %s173
    %p175 = scmp.eq.s32.totalorder %s23, 0
    %p176 = por %p174, %p175
    %s178 = sadd.s32 %s177, 1
    %p181 = scmp.eq.s32.totalorder %s17, 1
    %p182 = scmp.ne.s32.totalorder %s177, %s179
    %p183 = scmp.eq.s32.totalorder %s17, 0
    %p184 = por %p182, %p183
    %p185 = scmp.ne.s32.totalorder %s177, %s179
    %p186 = scmp.eq.s32.totalorder %s22, 1
    %p187 = por %p185, %p186
    %p188 = scmp.ne.s32.totalorder %s179, %s180
    %p189 = scmp.eq.s32.totalorder %s22, 0
    %p190 = por %p188, %p189
    %p191 = scmp.ne.s32.totalorder %s179, %s180
    %p192 = scmp.eq.s32.totalorder %s23, 1
    %p193 = por %p191, %p192
    %p195 = scmp.ne.s32.totalorder %s180, %s194
    %p196 = scmp.eq.s32.totalorder %s23, 0
    %p197 = por %p195, %p196
    %s199 = sadd.s32 %s198, 1
    %p202 = scmp.eq.s32.totalorder %s17, 1
    %p203 = scmp.ne.s32.totalorder %s198, %s200
    %p204 = scmp.eq.s32.totalorder %s17, 0
    %p205 = por %p203, %p204
    %p206 = scmp.ne.s32.totalorder %s198, %s200
    %p207 = scmp.eq.s32.totalorder %s22, 1
    %p208 = por %p206, %p207
    %p209 = scmp.ne.s32.totalorder %s200, %s201
    %p210 = scmp.eq.s32.totalorder %s22, 0
    %p211 = por %p209, %p210
    %p212 = scmp.ne.s32.totalorder %s200, %s201
    %p213 = scmp.eq.s32.totalorder %s23, 1
    %p214 = por %p212, %p213
    %p216 = scmp.ne.s32.totalorder %s201, %s215
    %p217 = scmp.eq.s32.totalorder %s23, 0
    %p218 = por %p216, %p217
    %s220 = sadd.s32 %s219, 1
    %p223 = scmp.eq.s32.totalorder %s17, 1
    %p224 = scmp.ne.s32.totalorder %s219, %s221
    %p225 = scmp.eq.s32.totalorder %s17, 0
    %p226 = por %p224, %p225
    %p227 = scmp.ne.s32.totalorder %s219, %s221
    %p228 = scmp.eq.s32.totalorder %s22, 1
    %p229 = por %p227, %p228
    %p230 = scmp.ne.s32.totalorder %s221, %s222
    %p231 = scmp.eq.s32.totalorder %s22, 0
    %p232 = por %p230, %p231
    %p233 = scmp.ne.s32.totalorder %s221, %s222
    %p234 = scmp.eq.s32.totalorder %s23, 1
    %p235 = por %p233, %p234
    %p237 = scmp.ne.s32.totalorder %s222, %s236
    %p238 = scmp.eq.s32.totalorder %s23, 0
    %p239 = por %p237, %p238
    %s241 = sadd.s32 %s240, 1
    %p244 = scmp.eq.s32.totalorder %s17, 1
    %p245 = scmp.ne.s32.totalorder %s240, %s242
    %p246 = scmp.eq.s32.totalorder %s17, 0
    %p247 = por %p245, %p246
    %p248 = scmp.ne.s32.totalorder %s240, %s242
    %p249 = scmp.eq.s32.totalorder %s22, 1
    %p250 = por %p248, %p249
    %p251 = scmp.ne.s32.totalorder %s242, %s243
    %p252 = scmp.eq.s32.totalorder %s22, 0
    %p253 = por %p251, %p252
    %p254 = scmp.ne.s32.totalorder %s242, %s243
    %p255 = scmp.eq.s32.totalorder %s23, 1
    %p256 = por %p254, %p255
    %p258 = scmp.ne.s32.totalorder %s243, %s257
    %p259 = scmp.eq.s32.totalorder %s23, 0
    %p260 = por %p258, %p259
    %s261 = ssub.s32 %s17, %s24
    %p262 = scmp.eq.s32.totalorder %s261, 0
    %s264 = sadd.s32 %s263, 1
    %s265 = scalar_select %p262, %s263, %s264
    %p268 = pneg %p262
    %p269 = scmp.eq.s32.totalorder %s17, 1
    %p270 = por %p268, %p269
    %p271 = scmp.ne.s32.totalorder %s263, %s266
    %p272 = scmp.eq.s32.totalorder %s17, 0
    %p273 = por %p271, %p272
    %p274 = scmp.ne.s32.totalorder %s263, %s266
    %p275 = scmp.eq.s32.totalorder %s22, 1
    %p276 = por %p274, %p275
    %p277 = scmp.ne.s32.totalorder %s266, %s267
    %p278 = scmp.eq.s32.totalorder %s22, 0
    %p279 = por %p277, %p278
    %p280 = scmp.ne.s32.totalorder %s266, %s267
    %p281 = scmp.eq.s32.totalorder %s23, 1
    %p282 = por %p280, %p281
    %p284 = scmp.ne.s32.totalorder %s267, %s283
    %p285 = scmp.eq.s32.totalorder %s23, 0
    %p286 = por %p284, %p285
    %p287 = scmp.le.s32.totalorder 1, %s17
    %p288 = scmp.lt.s32.totalorder %s17, 3
    %p289 = pnand %p287, %p288
    %p290 = pneg %p289
    // Predicated region
    $region9: #{_lambda_.3} parent=5 // pred_check
      _
    $region10: #{_lambda_.3} parent=5 // pred_check_branch
      %292 = sbr.rel (%p289) target = $region12
    $region11: #{_lambda_.3} parent=5 // pred_region
      %s293 = ssub.s32 %s17, 1
      // Predicated region
      $region13: #{_lambda_.3} parent=11 // pred_check
        %p294 = pneg %p64
      $region14: #{_lambda_.3} parent=11 // pred_check_branch
        %296 = sbr.rel (%p294) target = $region16
      $region15: #{_lambda_.3} parent=11 // pred_region
        _
      $region16: #{_lambda_.3} parent=11 // pred_fallthru
        _
      // Predicated region
      $region17: #{_lambda_.3} parent=11 // pred_check
        %p297 = pneg %p85
      $region18: #{_lambda_.3} parent=11 // pred_check_branch
        %299 = sbr.rel (%p297) target = $region20
      $region19: #{_lambda_.3} parent=11 // pred_region
        _
      $region20: #{_lambda_.3} parent=11 // pred_fallthru
        _
      // Predicated region
      $region21: #{_lambda_.3} parent=11 // pred_check
        %p300 = pneg %p106
      $region22: #{_lambda_.3} parent=11 // pred_check_branch
        %302 = sbr.rel (%p300) target = $region24
      $region23: #{_lambda_.3} parent=11 // pred_region
        _
      $region24: #{_lambda_.3} parent=11 // pred_fallthru
        _
      // Predicated region
      $region25: #{_lambda_.3} parent=11 // pred_check
        %p303 = pneg %p127
      $region26: #{_lambda_.3} parent=11 // pred_check_branch
        %305 = sbr.rel (%p303) target = $region28
      $region27: #{_lambda_.3} parent=11 // pred_region
        _
      $region28: #{_lambda_.3} parent=11 // pred_fallthru
        _
      // Predicated region
      $region29: #{_lambda_.3} parent=11 // pred_check
        %p306 = pneg %p148
      $region30: #{_lambda_.3} parent=11 // pred_check_branch
        %308 = sbr.rel (%p306) target = $region32
      $region31: #{_lambda_.3} parent=11 // pred_region
        _
      $region32: #{_lambda_.3} parent=11 // pred_fallthru
        _
      // Predicated region
      $region33: #{_lambda_.3} parent=11 // pred_check
        %p309 = pneg %p169
      $region34: #{_lambda_.3} parent=11 // pred_check_branch
        %311 = sbr.rel (%p309) target = $region36
      $region35: #{_lambda_.3} parent=11 // pred_region
        _
      $region36: #{_lambda_.3} parent=11 // pred_fallthru
        _
      // Predicated region
      $region37: #{_lambda_.3} parent=11 // pred_check
        %p312 = pneg %p190
      $region38: #{_lambda_.3} parent=11 // pred_check_branch
        %314 = sbr.rel (%p312) target = $region40
      $region39: #{_lambda_.3} parent=11 // pred_region
        _
      $region40: #{_lambda_.3} parent=11 // pred_fallthru
        _
      // Predicated region
      $region41: #{_lambda_.3} parent=11 // pred_check
        %p315 = pneg %p211
      $region42: #{_lambda_.3} parent=11 // pred_check_branch
        %317 = sbr.rel (%p315) target = $region44
      $region43: #{_lambda_.3} parent=11 // pred_region
        _
      $region44: #{_lambda_.3} parent=11 // pred_fallthru
        _
      // Predicated region
      $region45: #{_lambda_.3} parent=11 // pred_check
        %p318 = pneg %p232
      $region46: #{_lambda_.3} parent=11 // pred_check_branch
        %320 = sbr.rel (%p318) target = $region48
      $region47: #{_lambda_.3} parent=11 // pred_region
        _
      $region48: #{_lambda_.3} parent=11 // pred_fallthru
        _
      // Predicated region
      $region49: #{_lambda_.3} parent=11 // pred_check
        %p321 = pneg %p253
      $region50: #{_lambda_.3} parent=11 // pred_check_branch
        %323 = sbr.rel (%p321) target = $region52
      $region51: #{_lambda_.3} parent=11 // pred_region
        _
      $region52: #{_lambda_.3} parent=11 // pred_fallthru
        _
    $region12: #{_lambda_.3} parent=5 // pred_fallthru
      _
    %p324 = scmp.lt.s32.totalorder %s17, 2
    // Predicated region
    $region53: #{_lambda_.3} parent=5 // pred_check
      %p325 = pneg %p324
    $region54: #{_lambda_.3} parent=5 // pred_check_branch
      %327 = sbr.rel (%p325) target = $region56
    $region55: #{_lambda_.3} parent=5 // pred_region
      // Predicated region
      $region57: #{_lambda_.3} parent=55 // pred_check
        %p328 = pneg %p37
      $region58: #{_lambda_.3} parent=55 // pred_check_branch
        %330 = sbr.rel (%p328) target = $region60
      $region59: #{_lambda_.3} parent=55 // pred_region
        %p331 = scmp.lt.s32.totalorder %s17, 1
        %s332 = scalar_select %p331, %s17, 1
        %s333 = smul.addr %s332, 8
        %s334 = scalar_lea.vmem %s0, %s333
      $region60: #{_lambda_.3} parent=55 // pred_fallthru
        _
    $region56: #{_lambda_.3} parent=5 // pred_fallthru
      _
    %p335 = scmp.le.s32.totalorder 1, %s17
    %p336 = scmp.lt.s32.totalorder %s17, 3
    %p337 = pnand %p335, %p336
    %p338 = pneg %p337
    // Predicated region
    $region61: #{_lambda_.3} parent=5 // pred_check
      _
    $region62: #{_lambda_.3} parent=5 // pred_check_branch
      %340 = sbr.rel (%p337) target = $region64
    $region63: #{_lambda_.3} parent=5 // pred_region
      %s341 = ssub.s32 %s17, 1
      %p342 = scmp.lt.s32.totalorder %s22, 1
      %s343 = scalar_select %p342, %s22, 1
      %s344 = smul.addr %s343, 8
      %s345 = scalar_lea.vmem %s0, %s344
      %p346 = pneg %p43
      %p347 = pneg %p40
      %p348 = pneg %p64
      %p349 = pneg %p61
      %p350 = pneg %p85
      %p351 = pneg %p82
      %p352 = pneg %p106
      %p353 = pneg %p103
      %p354 = pneg %p127
      %p355 = pneg %p124
      %p356 = pneg %p148
      %p357 = pneg %p145
      %p358 = pneg %p169
      %p359 = pneg %p166
      %p360 = pneg %p190
      %p361 = pneg %p187
      %p362 = pneg %p211
      %p363 = pneg %p208
      %p364 = pneg %p232
      %p365 = pneg %p229
      %p366 = pneg %p253
      %p367 = pneg %p250
      %p368 = pneg %p279
      %p369 = pneg %p276
      %p370 = scmp.lt.s32.totalorder %s22, 1
      %s371 = scalar_select %p370, %s22, 1
      %s372 = scalar_lea.vmem %s11, %s371
      %p373 = scmp.lt.s32.totalorder %s22, 1
      %s374 = scalar_select %p373, %s22, 1
      %s375 = smul.addr %s374, 8
      %s376 = scalar_lea.vmem %s0, %s375
      %p377 = scmp.lt.s32.totalorder %s22, 1
      %s378 = scalar_select %p377, %s22, 1
      %s379 = scalar_lea.vmem %s11, %s378
      %v381 = vld [vmem:[%s376] sm:$0x3f]
      %v382 = vpack.c.bf16 %v381, %v381
      %v383 = vld [vmem:[%s1] sm:$0xff]
      %v384 = vld [vmem:[%s1 + $0x8] sm:$0xff]
      %v385 = vld [vmem:[%s1 + $0x10] sm:$0xff]
      %v386 = vld [vmem:[%s1 + $0x18] sm:$0xff]
      %v387 = vld [vmem:[%s1 + $0x20] sm:$0xff]
      %v388 = vld [vmem:[%s1 + $0x28] sm:$0xff]
      %v389 = vld [vmem:[%s1 + $0x30] sm:$0x3]
      %v390 = vpack.c.bf16 %v384, %v383
      %v391 = vpack.c.bf16 %v386, %v385
      %v392 = vpack.c.bf16 %v388, %v387
      %v393 = vpack.c.bf16 %v389, %v389
      %v394 = vld [vmem:[%s2] sm:$0x1]
      %v396 = vlaneseq
      %v397 = vshrl.u32 %v396, 7
      %v398 = vsub.s32 0, %v397
      %v399 = vrot.slane %v394, %v398
      %vm401 = vcmask 408576
      %v403 = vsel %vm401, %v382, 0
      %vm405 = vcmask 1040384
      %v407 = vsel %vm405, %v393, 0
      %409 = vmatprep.subr.bf16.mxu0 0
      %410 = vmatpush1.bf16.msra.mxu0 %v390
      %411 = vmatprep.subr.bf16.mxu0 0
      %412 = vmatpush1.bf16.msra.mxu0 %v391
      %413 = vmatprep.subr.bf16.mxu0 0
      %414 = vmatpush1.bf16.msra.mxu0 %v392
      %415 = vmatprep.subr.bf16.mxu0 0
      %416 = vmatpush1.bf16.msra.mxu0 %v407
      %417 = vmatprep.subr.bf16.mxu0 0
      %418 = vmatpush1.bf16.msra.mxu0 0
      %419 = vmatprep.subr.bf16.mxu0 0
      %420 = vmatpush1.bf16.msra.mxu0 0
      %421 = vmatprep.subr.bf16.mxu0 0
      %422 = vmatpush1.bf16.msra.mxu0 0
      %423 = vmatprep.subr.bf16.mxu0 0
      %424 = vmatpush1.bf16.msra.mxu0 0
      %425 = vmatprep.subr.bf16.mxu0 0
      %426 = vmatpush1.bf16.msra.mxu0 0
      %427 = vmatprep.subr.bf16.mxu0 0
      %428 = vmatpush1.bf16.msra.mxu0 0
      %429 = vmatprep.subr.bf16.mxu0 0
      %430 = vmatpush1.bf16.msra.mxu0 0
      %431 = vmatprep.subr.bf16.mxu0 0
      %432 = vmatpush1.bf16.msra.mxu0 0
      %433 = vmatprep.subr.bf16.mxu0 0
      %434 = vmatpush1.bf16.msra.mxu0 0
      %435 = vmatprep.subr.bf16.mxu0 0
      %436 = vmatpush1.bf16.msra.mxu0 0
      %437 = vmatprep.subr.bf16.mxu0 0
      %438 = vmatpush1.bf16.msra.mxu0 0
      %439 = vmatprep.subr.bf16.mxu0 0
      %440 = vmatpush1.bf16.msra.mxu0 0
      %441 = vmatprep.mubr.bf16.mxu0 0
      %442 = vmatmul.mubr.bf16.gmra.mrb[0].mxu0 %v403
      %v443 = vpop.f32.mrb[0].mxu0
      %v444 = vadd.f32 %v399, %v443
      %v445 = vpop.f32.mrb[0].mxu0
      %v446 = vpop.f32.mrb[0].mxu0
      %v447 = vpop.f32.mrb[0].mxu0
      %448 = vdwg.mxu0
      %v449 = vmax.f32 %v444, 0.0
      %451 = vrot.lane.b32.xlu0 %v449, 112
      %v452 = vpop.permute.xlu0 %451
      %v454 = vmax.f32 %v449, %v452
      %v456 = vrot.slane %v454, 1
      %457 = vrot.lane.b32.xlu0 %v456, 16
      %v458 = vpop.permute.xlu0 %457
      %v460 = vrot.slane %v454, 2
      %461 = vrot.lane.b32.xlu0 %v460, 32
      %v462 = vpop.permute.xlu0 %461
      %v464 = vrot.slane %v454, 3
      %465 = vrot.lane.b32.xlu0 %v464, 48
      %v466 = vpop.permute.xlu0 %465
      %v468 = vrot.slane %v454, 4
      %469 = vrot.lane.b32.xlu0 %v468, 64
      %v470 = vpop.permute.xlu0 %469
      %vm472 = vcmask 130048
      %v473 = vsel %vm472, %v454, %v458
      %vm474 = vcmask 261120
      %v475 = vsel %vm474, %v473, %v462
      %vm476 = vcmask 392192
      %v477 = vsel %vm476, %v475, %v466
      %vm478 = vcmask 523264
      %v479 = vsel %vm478, %v477, %v470
      %v480 = vpack.c.bf16 %v479, %v479
      %v481 = vld [vmem:[%s3] sm:$0xff]
      %v482 = vld [vmem:[%s3 + $0x8] sm:$0xff]
      %v483 = vld [vmem:[%s3 + $0x10] sm:$0xff]
      %v484 = vld [vmem:[%s3 + $0x18] sm:$0xff]
      %v485 = vld [vmem:[%s3 + $0x20] sm:$0xff]
      %v486 = vld [vmem:[%s3 + $0x28] sm:$0xff]
      %v487 = vld [vmem:[%s3 + $0x30] sm:$0xff]
      %v488 = vld [vmem:[%s3 + $0x38] sm:$0xff]
      %v489 = vld [vmem:[%s3 + $0x40] sm:$0xff]
      %v490 = vld [vmem:[%s3 + $0x48] sm:$0xff]
      %v491 = vpack.c.bf16 %v482, %v481
      %v492 = vpack.c.bf16 %v484, %v483
      %v493 = vpack.c.bf16 %v486, %v485
      %v494 = vpack.c.bf16 %v488, %v487
      %v495 = vpack.c.bf16 %v490, %v489
      %v496 = vld [vmem:[%s4] sm:$0x1]
      %v498 = vlaneseq
      %v499 = vshrl.u32 %v498, 7
      %v500 = vsub.s32 0, %v499
      %v501 = vrot.slane %v496, %v500
      %vm503 = vcmask 654336
      %v505 = vsel %vm503, %v480, 0
      %507 = vmatprep.subr.bf16.mxu0 0
      %508 = vmatpush1.bf16.msra.mxu0 %v491
      %509 = vmatprep.subr.bf16.mxu0 0
      %510 = vmatpush1.bf16.msra.mxu0 %v492
      %511 = vmatprep.subr.bf16.mxu0 0
      %512 = vmatpush1.bf16.msra.mxu0 %v493
      %513 = vmatprep.subr.bf16.mxu0 0
      %514 = vmatpush1.bf16.msra.mxu0 %v494
      %515 = vmatprep.subr.bf16.mxu0 0
      %516 = vmatpush1.bf16.msra.mxu0 %v495
      %517 = vmatprep.subr.bf16.mxu0 0
      %518 = vmatpush1.bf16.msra.mxu0 0
      %519 = vmatprep.subr.bf16.mxu0 0
      %520 = vmatpush1.bf16.msra.mxu0 0
      %521 = vmatprep.subr.bf16.mxu0 0
      %522 = vmatpush1.bf16.msra.mxu0 0
      %523 = vmatprep.subr.bf16.mxu0 0
      %524 = vmatpush1.bf16.msra.mxu0 0
      %525 = vmatprep.subr.bf16.mxu0 0
      %526 = vmatpush1.bf16.msra.mxu0 0
      %527 = vmatprep.subr.bf16.mxu0 0
      %528 = vmatpush1.bf16.msra.mxu0 0
      %529 = vmatprep.subr.bf16.mxu0 0
      %530 = vmatpush1.bf16.msra.mxu0 0
      %531 = vmatprep.subr.bf16.mxu0 0
      %532 = vmatpush1.bf16.msra.mxu0 0
      %533 = vmatprep.subr.bf16.mxu0 0
      %534 = vmatpush1.bf16.msra.mxu0 0
      %535 = vmatprep.subr.bf16.mxu0 0
      %536 = vmatpush1.bf16.msra.mxu0 0
      %537 = vmatprep.subr.bf16.mxu0 0
      %538 = vmatpush1.bf16.msra.mxu0 0
      %539 = vmatprep.mubr.bf16.mxu0 0
      %540 = vmatmul.mubr.bf16.gmra.mrb[0].mxu0 %v505
      %v541 = vpop.f32.mrb[0].mxu0
      %v542 = vadd.f32 %v501, %v541
      %v543 = vpop.f32.mrb[0].mxu0
      %v544 = vpop.f32.mrb[0].mxu0
      %v545 = vpop.f32.mrb[0].mxu0
      %546 = vdwg.mxu0
      %v547 = vmax.f32 %v542, 0.0
      %v549 = vrot.slane %v547, 1
      %550 = vrot.lane.b32.xlu0 %v549, 32
      %v551 = vpop.permute.xlu0 %550
      %v553 = vsel %vm474, %v547, %v551
      %v554 = vpack.c.bf16 %v553, %v553
      %v555 = vld [vmem:[%s5] sm:$0xff]
      %v556 = vld [vmem:[%s5 + $0x8] sm:$0xff]
      %v557 = vld [vmem:[%s5 + $0x10] sm:$0xff]
      %v558 = vld [vmem:[%s5 + $0x18] sm:$0xff]
      %v559 = vld [vmem:[%s5 + $0x20] sm:$0xff]
      %v560 = vld [vmem:[%s5 + $0x28] sm:$0xff]
      %v561 = vld [vmem:[%s5 + $0x30] sm:$0xff]
      %v562 = vld [vmem:[%s5 + $0x38] sm:$0xff]
      %v563 = vpack.c.bf16 %v556, %v555
      %v564 = vpack.c.bf16 %v558, %v557
      %v565 = vpack.c.bf16 %v560, %v559
      %v566 = vpack.c.bf16 %v562, %v561
      %v567 = vld [vmem:[%s6] sm:$0x1]
      %v569 = vsel %vm478, %v554, 0
      %571 = vmatprep.subr.bf16.mxu0 0
      %572 = vmatpush1.bf16.msra.mxu0 %v563
      %573 = vmatprep.subr.bf16.mxu0 0
      %574 = vmatpush1.bf16.msra.mxu0 %v564
      %575 = vmatprep.subr.bf16.mxu0 0
      %576 = vmatpush1.bf16.msra.mxu0 %v565
      %577 = vmatprep.subr.bf16.mxu0 0
      %578 = vmatpush1.bf16.msra.mxu0 %v566
      %579 = vmatprep.subr.bf16.mxu0 0
      %580 = vmatpush1.bf16.msra.mxu0 0
      %581 = vmatprep.subr.bf16.mxu0 0
      %582 = vmatpush1.bf16.msra.mxu0 0
      %583 = vmatprep.subr.bf16.mxu0 0
      %584 = vmatpush1.bf16.msra.mxu0 0
      %585 = vmatprep.subr.bf16.mxu0 0
      %586 = vmatpush1.bf16.msra.mxu0 0
      %587 = vmatprep.subr.bf16.mxu0 0
      %588 = vmatpush1.bf16.msra.mxu0 0
      %589 = vmatprep.subr.bf16.mxu0 0
      %590 = vmatpush1.bf16.msra.mxu0 0
      %591 = vmatprep.subr.bf16.mxu0 0
      %592 = vmatpush1.bf16.msra.mxu0 0
      %593 = vmatprep.subr.bf16.mxu0 0
      %594 = vmatpush1.bf16.msra.mxu0 0
      %595 = vmatprep.subr.bf16.mxu0 0
      %596 = vmatpush1.bf16.msra.mxu0 0
      %597 = vmatprep.subr.bf16.mxu0 0
      %598 = vmatpush1.bf16.msra.mxu0 0
      %599 = vmatprep.subr.bf16.mxu0 0
      %600 = vmatpush1.bf16.msra.mxu0 0
      %601 = vmatprep.subr.bf16.mxu0 0
      %602 = vmatpush1.bf16.msra.mxu0 0
      %603 = vmatprep.mubr.bf16.mxu0 0
      %604 = vmatmul.mubr.bf16.gmra.mrb[0].mxu0 %v569
      %v605 = vpop.f32.mrb[0].mxu0
      %v606 = vadd.f32 %v567, %v605
      %v607 = vpop.f32.mrb[0].mxu0
      %v608 = vpop.f32.mrb[0].mxu0
      %v609 = vpop.f32.mrb[0].mxu0
      %610 = vdwg.mxu0
      %v611 = vmax.f32 %v606, 0.0
      %v612 = vpack.c.bf16 %v611, %v611
      %v613 = vld [vmem:[%s7] sm:$0xff]
      %v614 = vld [vmem:[%s7 + $0x8] sm:$0xff]
      %v615 = vld [vmem:[%s7 + $0x10] sm:$0xff]
      %v616 = vld [vmem:[%s7 + $0x18] sm:$0xff]
      %v617 = vpack.c.bf16 %v614, %v613
      %v618 = vpack.c.bf16 %v616, %v615
      %v619 = vld [vmem:[%s8] sm:$0x1]
      %v621 = vsel %vm474, %v612, 0
      %623 = vmatprep.subr.bf16.mxu0 0
      %624 = vmatpush1.bf16.msra.mxu0 %v617
      %625 = vmatprep.subr.bf16.mxu0 0
      %626 = vmatpush1.bf16.msra.mxu0 %v618
      %627 = vmatprep.subr.bf16.mxu0 0
      %628 = vmatpush1.bf16.msra.mxu0 0
      %629 = vmatprep.subr.bf16.mxu0 0
      %630 = vmatpush1.bf16.msra.mxu0 0
      %631 = vmatprep.subr.bf16.mxu0 0
      %632 = vmatpush1.bf16.msra.mxu0 0
      %633 = vmatprep.subr.bf16.mxu0 0
      %634 = vmatpush1.bf16.msra.mxu0 0
      %635 = vmatprep.subr.bf16.mxu0 0
      %636 = vmatpush1.bf16.msra.mxu0 0
      %637 = vmatprep.subr.bf16.mxu0 0
      %638 = vmatpush1.bf16.msra.mxu0 0
      %639 = vmatprep.subr.bf16.mxu0 0
      %640 = vmatpush1.bf16.msra.mxu0 0
      %641 = vmatprep.subr.bf16.mxu0 0
      %642 = vmatpush1.bf16.msra.mxu0 0
      %643 = vmatprep.subr.bf16.mxu0 0
      %644 = vmatpush1.bf16.msra.mxu0 0
      %645 = vmatprep.subr.bf16.mxu0 0
      %646 = vmatpush1.bf16.msra.mxu0 0
      %647 = vmatprep.subr.bf16.mxu0 0
      %648 = vmatpush1.bf16.msra.mxu0 0
      %649 = vmatprep.subr.bf16.mxu0 0
      %650 = vmatpush1.bf16.msra.mxu0 0
      %651 = vmatprep.subr.bf16.mxu0 0
      %652 = vmatpush1.bf16.msra.mxu0 0
      %653 = vmatprep.subr.bf16.mxu0 0
      %654 = vmatpush1.bf16.msra.mxu0 0
      %655 = vmatprep.mubr.bf16.mxu0 0
      %656 = vmatmul.mubr.bf16.gmra.mrb[0].mxu0 %v621
      %v657 = vpop.f32.mrb[0].mxu0
      %v658 = vadd.f32 %v619, %v657
      %v659 = vpop.f32.mrb[0].mxu0
      %v660 = vpop.f32.mrb[0].mxu0
      %v661 = vpop.f32.mrb[0].mxu0
      %662 = vdwg.mxu0
      %v663 = vmax.f32 %v658, 0.0
      %v664 = vpack.c.bf16 %v663, %v663
      %v665 = vld [vmem:[%s9] sm:$0xff]
      %v666 = vld [vmem:[%s9 + $0x8] sm:$0xff]
      %v667 = vpack.c.bf16 %v666, %v665
      %v668 = vld [vmem:[%s10] sm:$0x1]
      %v670 = vsel %vm472, %v664, 0
      %672 = vmatprep.subr.bf16.mxu0 0
      %673 = vmatpush1.bf16.msra.mxu0 %v667
      %674 = vmatprep.subr.bf16.mxu0 0
      %675 = vmatpush1.bf16.msra.mxu0 0
      %676 = vmatprep.subr.bf16.mxu0 0
      %677 = vmatpush1.bf16.msra.mxu0 0
      %678 = vmatprep.subr.bf16.mxu0 0
      %679 = vmatpush1.bf16.msra.mxu0 0
      %680 = vmatprep.subr.bf16.mxu0 0
      %681 = vmatpush1.bf16.msra.mxu0 0
      %682 = vmatprep.subr.bf16.mxu0 0
      %683 = vmatpush1.bf16.msra.mxu0 0
      %684 = vmatprep.subr.bf16.mxu0 0
      %685 = vmatpush1.bf16.msra.mxu0 0
      %686 = vmatprep.subr.bf16.mxu0 0
      %687 = vmatpush1.bf16.msra.mxu0 0
      %688 = vmatprep.subr.bf16.mxu0 0
      %689 = vmatpush1.bf16.msra.mxu0 0
      %690 = vmatprep.subr.bf16.mxu0 0
      %691 = vmatpush1.bf16.msra.mxu0 0
      %692 = vmatprep.subr.bf16.mxu0 0
      %693 = vmatpush1.bf16.msra.mxu0 0
      %694 = vmatprep.subr.bf16.mxu0 0
      %695 = vmatpush1.bf16.msra.mxu0 0
      %696 = vmatprep.subr.bf16.mxu0 0
      %697 = vmatpush1.bf16.msra.mxu0 0
      %698 = vmatprep.subr.bf16.mxu0 0
      %699 = vmatpush1.bf16.msra.mxu0 0
      %700 = vmatprep.subr.bf16.mxu0 0
      %701 = vmatpush1.bf16.msra.mxu0 0
      %702 = vmatprep.subr.bf16.mxu0 0
      %703 = vmatpush1.bf16.msra.mxu0 0
      %704 = vmatprep.mubr.bf16.mxu0 0
      %705 = vmatmul.mubr.bf16.gmra.mrb[0].mxu0 %v670
      %v706 = vpop.f32.mrb[0].mxu0
      %v707 = vadd.f32 %v668, %v706
      %v708 = vpop.f32.mrb[0].mxu0
      %v709 = vpop.f32.mrb[0].mxu0
      %v710 = vpop.f32.mrb[0].mxu0
      %711 = vdwg.mxu0
      %vm712 = vcmask 16384
      %v713 = vsel %vm712, %v707, -inf
      %714 = vmax.xlane.f32.xlu0 %v713
      %v715 = vpop.xlane.xlu0 %714
      %v716 = vsub.f32 %v707, %v715
      %v717 = vmul.f32 %v716, 1.442695
      %v718 = vpow.pop %v717
      %v719 = vsel %vm712, %v718, 0.0
      %720 = vadd.xlane.f32.xlu0 %v719
      %v721 = vpop.xlane.xlu0 %720
      %v722 = vlog2.pop %v721
      %v723 = vmul.f32 %v722, 0.6931472
      %v724 = vsub.f32 %v716, %v723
      %725 = vst.msk [vmem:[%s379] sm:$0x1] %vm712, %v724
      %p726 = scmp.lt.s32.totalorder %s22, 1
      %s727 = scalar_select %p726, %s22, 1
      %s728 = scalar_lea.vmem %s11, %s727
      // Predicated region
      $region65: #{_lambda_.3} parent=63 // pred_check
        %p729 = pneg %p276
      $region66: #{_lambda_.3} parent=63 // pred_check_branch
        %731 = sbr.rel (%p729) target = $region68
      $region67: #{_lambda_.3} parent=63 // pred_region
        _
      $region68: #{_lambda_.3} parent=63 // pred_fallthru
        _
    $region64: #{_lambda_.3} parent=5 // pred_fallthru
      _
    %p732 = scmp.le.s32.totalorder 2, %s17
    // Predicated region
    $region69: #{_lambda_.3} parent=5 // pred_check
      %p733 = pneg %p732
    $region70: #{_lambda_.3} parent=5 // pred_check_branch
      %735 = sbr.rel (%p733) target = $region72
    $region71: #{_lambda_.3} parent=5 // pred_region
      %s736 = ssub.s32 %s17, 2
      // Predicated region
      $region73: #{_lambda_.3} parent=71 // pred_check
        %p737 = pneg %p282
      $region74: #{_lambda_.3} parent=71 // pred_check_branch
        %739 = sbr.rel (%p737) target = $region76
      $region75: #{_lambda_.3} parent=71 // pred_region
        %p740 = scmp.lt.s32.totalorder %s23, 1
        %s741 = scalar_select %p740, %s23, 1
        %s742 = scalar_lea.vmem %s11, %s741
      $region76: #{_lambda_.3} parent=71 // pred_fallthru
        _
    $region72: #{_lambda_.3} parent=5 // pred_fallthru
      _
  $region6: #{_lambda_.3} parent=0 // loop_footer
    %s21 = sadd.s32 1, %s17
  $region7: #{_lambda_.3} parent=0 // loop_footer_branch
    %16 = sbr.rel target = $region3
  $region8: #{_lambda_.3} parent=0 // loop_exit
    _

</llo_original>
